<compile_context>
chip_gen: v7x
topology: tpu7x:2x2x1
jax: 0.10.0
libtpu: 0.0.40
codegen_flags: <defaults>
</compile_context>

<pallas_src>
import functools
import math

import jax
import jax.numpy as jnp
from jax.experimental import pallas as pl
from jax.experimental.pallas import tpu as pltpu

HIDDEN = 48                      # HIDDEN_SIZE
INPUT_SIZE = 7                   # raw signal length fed to Conv1d
KSIZE = 3                        # conv kernel size
CONV_OUT = 6                     # conv out_channels == LSTM "batch" dim
BATCH_PAD = 8                    # padded LSTM batch dim (sublane granularity)
FEAT = INPUT_SIZE - KSIZE + 1    # 5 == LSTM input feature size
GATE_PAD = 128                   # each gate slab padded 48 -> 128 lanes (one vreg)


def _round_up(n, m):
    return ((n + m - 1) // m) * m


def _make_kernel(T, n_chunks, last_steps, unroll):
    GP = GATE_PAD

    def kernel(ih_ref, whh_ref, out_ref, h_sc, c_sc):
        # Zero the cross-chunk carry at the very first chunk only.
        @pl.when(pl.program_id(0) == 0)
        def _():
            h_sc[...] = jnp.zeros_like(h_sc)
            c_sc[...] = jnp.zeros_like(c_sc)

        whh = whh_ref[...]     # (128, 512) loop-invariant recurrent weight (i,f,o,g)
        # Possible further step: keep w_hh resident in the MXU via
        # pltpu.matmul_push_rhs/acc_lhs/pop if the bundle dump shows per-step re-push.

        def run(nsteps):
            def step(t, carry):
                h, c = carry                                           # (8,128) each
                gates = ih_ref[t] + jnp.dot(h, whh,
                                            preferred_element_type=jnp.float32)  # (8,512)
                # One EUP pass over all gates: i/f/o columns were pre-scaled by 0.5,
                # so sigmoid(z) = 0.5 + 0.5*tanh(gates); g = tanh(gates).
                th = jnp.tanh(gates)
                ifo = 0.5 * th[:, :3 * GP] + 0.5
                i = ifo[:, :GP]
                f = ifo[:, GP:2 * GP]
                o = ifo[:, 2 * GP:]
                g = th[:, 3 * GP:]
                c_new = f * c + i * g
                h_new = o * jnp.tanh(c_new)
                out_ref[t] = h_new            # aligned, lane-dense (8,128) vreg store
                return (h_new, c_new)

            hN, cN = jax.lax.fori_loop(0, nsteps, step, (h_sc[...], c_sc[...]),
                                       unroll=max(1, min(unroll, nsteps)))
            h_sc[...] = hN
            c_sc[...] = cN

        if n_chunks == 1:
            run(last_steps)
        elif last_steps == T:
            run(T)
        else:
            # Last (partial) chunk runs a shorter, statically-bounded loop so no serial
            # latency is wasted on padded timesteps.
            @pl.when(pl.program_id(0) < n_chunks - 1)
            def _():
                run(T)

            @pl.when(pl.program_id(0) == n_chunks - 1)
            def _():
                run(last_steps)

    return kernel


def lstm_conv_forward(x, params, *, chunk=256, unroll=8):
    """x: (S, 1, 7) float32  ->  (S, 1, 1) float32 (same semantics as the nn.Module)."""
    wc, bc, w_ih, w_hh, b_ih, b_hh, w1, b1, w2, b2 = params
    S = x.shape[0]
    H = HIDDEN
    GP = GATE_PAD
    hp = jax.lax.Precision.HIGHEST

    # ---- Non-recurrent prologue (XLA, parallel over time) ---------------------------
    # im2col + Conv1d(1->6, k=3): (S, 6, 5)
    xr = x[:, 0, :]                                                           # (S, 7)
    patches = jnp.stack([xr[:, k:k + FEAT] for k in range(KSIZE)], axis=1)    # (S, 3, 5)
    conv = jnp.einsum('ok,skf->sof', wc[:, 0, :], patches,
                      precision=hp) + bc[None, :, None]                       # (S, 6, 5)

    # Gate reorder i,f,g,o -> i,f,o,g; pre-scale i/f/o rows by 0.5 so the kernel can
    # compute sigmoid with a single tanh over all four gate slabs.
    def permute_gates(m):
        return jnp.concatenate([m[:2 * H], m[3 * H:4 * H], m[2 * H:3 * H]], axis=0)

    gate_scale = jnp.concatenate([jnp.full((3 * H,), 0.5, jnp.float32),
                                  jnp.ones((H,), jnp.float32)])
    w_ih_p = permute_gates(w_ih) * gate_scale[:, None]       # (4H, 5)
    w_hh_p = permute_gates(w_hh) * gate_scale[:, None]       # (4H, H)
    b_p = permute_gates(b_ih + b_hh) * gate_scale            # (4H,)

    # Input-to-hidden projection for all timesteps: one big parallel matmul.
    ih = jnp.einsum('sof,gf->sog', conv, w_ih_p,
                    precision=hp) + b_p[None, None, :]                        # (S, 6, 4H)

    # Lane-align every gate slab 48 -> 128 so each per-step gate slice is one aligned
    # vreg inside the kernel.  Zero-filled pad lanes stay exactly 0 in the recurrence.
    def pad_gate_lanes(a):                                    # (..., 4H) -> (..., 4*GP)
        pads = [(0, 0)] * (a.ndim - 1)
        return jnp.concatenate(
            [jnp.pad(a[..., k * H:(k + 1) * H], pads + [(0, GP - H)]) for k in range(4)],
            axis=-1)

    T = min(chunk, _round_up(S, 8))
    n_chunks = -(-S // T)
    S_pad = n_chunks * T
    last_steps = S - (n_chunks - 1) * T

    ih_p = pad_gate_lanes(ih)                                                 # (S, 6, 512)
    ih_p = jnp.pad(ih_p, ((0, S_pad - S), (0, BATCH_PAD - CONV_OUT), (0, 0))) # (S_pad, 8, 512)

    whh_p = jnp.pad(pad_gate_lanes(w_hh_p.T), ((0, GP - H), (0, 0)))          # (128, 512)

    kernel = _make_kernel(T, n_chunks, last_steps, unroll)
    hist = pl.pallas_call(
        kernel,
        out_shape=jax.ShapeDtypeStruct((S_pad, BATCH_PAD, GP), jnp.float32),
        grid_spec=pltpu.PrefetchScalarGridSpec(
            num_scalar_prefetch=0,
            grid=(n_chunks,),
            in_specs=[
                pl.BlockSpec((T, BATCH_PAD, 4 * GP), lambda c: (c, 0, 0)),    # ih chunk
                pl.BlockSpec((GP, 4 * GP), lambda c: (0, 0)),                 # W_hh (padded)
            ],
            out_specs=pl.BlockSpec((T, BATCH_PAD, GP), lambda c: (c, 0, 0)),  # h history
            scratch_shapes=[
                pltpu.VMEM((BATCH_PAD, GP), jnp.float32),    # h carry (across chunks)
                pltpu.VMEM((BATCH_PAD, GP), jnp.float32),    # c carry (across chunks)
            ]),
        compiler_params=pltpu.CompilerParams(
            # Time axis is a recurrence: must stay sequential ("arbitrary"), never "parallel".
            dimension_semantics=("arbitrary",),
            vmem_limit_bytes=32 * 1024 * 1024),
    )(ih_p, whh_p)

    # ---- Output head (reg_1 -> reg_2): fully parallel, done in XLA ------------------
    h_hist = hist[:S, :CONV_OUT, :H]                                          # (S, 6, 48)
    y1 = jnp.einsum('sbh,h->sb', h_hist, w1[0], precision=hp) + b1[0]         # (S, 6)
    y2 = jnp.einsum('sb,b->s', y1, w2[0], precision=hp) + b2[0]               # (S,)
    return y2.reshape(S, 1, 1)


def reference_forward(x, params):
    """Pure-JAX reference matching PyTorch semantics (for validation)."""
    wc, bc, w_ih, w_hh, b_ih, b_hh, w1, b1, w2, b2 = params
    S = x.shape[0]
    hp = jax.lax.Precision.HIGHEST
    xr = x[:, 0, :]
    patches = jnp.stack([xr[:, k:k + FEAT] for k in range(KSIZE)], axis=-1)   # (S, 5, 3)
    conv = jnp.einsum('sfk,ok->sof', patches, wc[:, 0, :],
                      precision=hp) + bc[None, :, None]                       # (S, 6, 5)

    def step(carry, x_t):
        h, c = carry
        gates = (jnp.dot(x_t, w_ih.T, precision=hp)
                 + jnp.dot(h, w_hh.T, precision=hp) + b_ih + b_hh)
        i = jax.nn.sigmoid(gates[:, :HIDDEN])
        f = jax.nn.sigmoid(gates[:, HIDDEN:2 * HIDDEN])
        g = jnp.tanh(gates[:, 2 * HIDDEN:3 * HIDDEN])
        o = jax.nn.sigmoid(gates[:, 3 * HIDDEN:])
        c = f * c + i * g
        h = o * jnp.tanh(c)
        return (h, c), h

    h0 = jnp.zeros((CONV_OUT, HIDDEN), jnp.float32)
    c0 = jnp.zeros((CONV_OUT, HIDDEN), jnp.float32)
    _, hs = jax.lax.scan(step, (h0, c0), conv)               # (S, 6, H)
    y1 = hs.reshape(S * CONV_OUT, HIDDEN) @ w1.T + b1        # (S*6, 1)
    y2 = y1.reshape(S, CONV_OUT) @ w2.T + b2                 # (S, 1)
    return y2.reshape(S, 1, 1)


def init_params(key):
    ks = jax.random.split(key, 10)

    def u(k, shape, bound):
        return jax.random.uniform(k, shape, jnp.float32, -bound, bound)

    bc_ = 1.0 / math.sqrt(1 * KSIZE)
    bh = 1.0 / math.sqrt(HIDDEN)
    b1_ = 1.0 / math.sqrt(HIDDEN)
    b2_ = 1.0 / math.sqrt(CONV_OUT)
    wc = u(ks[0], (CONV_OUT, 1, KSIZE), bc_)
    bc = u(ks[1], (CONV_OUT,), bc_)
    w_ih = u(ks[2], (4 * HIDDEN, FEAT), bh)
    w_hh = u(ks[3], (4 * HIDDEN, HIDDEN), bh)
    b_ih = u(ks[4], (4 * HIDDEN,), bh)
    b_hh = u(ks[5], (4 * HIDDEN,), bh)
    w1 = u(ks[6], (1, HIDDEN), b1_)
    b1 = u(ks[7], (1,), b1_)
    w2 = u(ks[8], (1, CONV_OUT), b2_)
    b2 = u(ks[9], (1,), b2_)
    return (wc, bc, w_ih, w_hh, b_ih, b_hh, w1, b1, w2, b2)


if __name__ == "__main__":
    key = jax.random.PRNGKey(0)
    pkey, xkey = jax.random.split(key)
    params = init_params(pkey)

    # Case 1: single chunk.  Case 2: multiple chunks with a partial tail chunk, so the
    # cross-chunk h/c carry and the shortened last-chunk loop are both exercised.
    for S, chunk in ((8, 256), (40, 16)):
        x = jax.random.normal(jax.random.fold_in(xkey, S), (S, 1, INPUT_SIZE),
                              dtype=jnp.float32)
        fwd = jax.jit(functools.partial(lstm_conv_forward, params=params, chunk=chunk))
        out = jax.block_until_ready(fwd(x))
        ref = jax.block_until_ready(reference_forward(x, params))
        assert out.shape == (S, 1, 1), out.shape
        err = float(jnp.max(jnp.abs(out - ref)))
        assert jnp.allclose(out, ref, rtol=1e-3, atol=1e-3), (S, err)
    print("KERNEL_OK")
</pallas_src>

<mosaic_0001>
module attributes {stable_mosaic.version = 11 : i64} {
  func.func @kernel(%arg0: i32, %arg1: memref<8x8x512xf32, #tpu.memory_space<vmem>>, %arg2: memref<128x512xf32, #tpu.memory_space<vmem>>, %arg3: memref<8x8x128xf32, #tpu.memory_space<vmem>>, %arg4: memref<8x128xf32, #tpu.memory_space<vmem>>, %arg5: memref<8x128xf32, #tpu.memory_space<vmem>>) attributes {dimension_semantics = [#tpu.dimension_semantics<arbitrary>], iteration_bounds = array<i64: 1>, scalar_prefetch = 0 : i64, scratch_operands = 2 : i64, tpu.core_type = #tpu.core_type<tc>, window_params = [{transform_indices = @transform_0, window_bounds = array<i64: 8, 8, 512>}, {pipeline_mode = #tpu.pipeline_mode<synchronous>, transform_indices = @transform_1, window_bounds = array<i64: 128, 512>}, {transform_indices = @transform_2, window_bounds = array<i64: 8, 8, 128>}]} {
    %c0_i32 = arith.constant 0 : i32
    %0 = arith.cmpi eq, %arg0, %c0_i32 : i32
    %1 = arith.extui %0 : i1 to i32
    %c0_i32_0 = arith.constant 0 : i32
    %2 = arith.cmpi ne, %1, %c0_i32_0 : i32
    scf.if %2 {
      %cst_66 = arith.constant 0.000000e+00 : f32
      %200 = vector.broadcast %cst_66 : f32 to vector<8x128xf32>
      %c0_67 = arith.constant 0 : index
      %c0_68 = arith.constant 0 : index
      %201 = vector.load %arg4[%c0_67, %c0_68] : memref<8x128xf32, #tpu.memory_space<vmem>>, vector<8x128xf32>
      tpu.vector_store %arg4[%c0_67, %c0_68], %200 {strides = array<i32>} : memref<8x128xf32, #tpu.memory_space<vmem>>, vector<8x128xf32>,
      %cst_69 = arith.constant 0.000000e+00 : f32
      %202 = vector.broadcast %cst_69 : f32 to vector<8x128xf32>
      %c0_70 = arith.constant 0 : index
      %c0_71 = arith.constant 0 : index
      %203 = vector.load %arg5[%c0_70, %c0_71] : memref<8x128xf32, #tpu.memory_space<vmem>>, vector<8x128xf32>
      tpu.vector_store %arg5[%c0_70, %c0_71], %202 {strides = array<i32>} : memref<8x128xf32, #tpu.memory_space<vmem>>, vector<8x128xf32>,
    } else {
    }
    %c0 = arith.constant 0 : index
    %c0_1 = arith.constant 0 : index
    %3 = vector.load %arg2[%c0, %c0_1] : memref<128x512xf32, #tpu.memory_space<vmem>>, vector<128x512xf32>
    %c0_2 = arith.constant 0 : index
    %c0_3 = arith.constant 0 : index
    %4 = vector.load %arg4[%c0_2, %c0_3] : memref<8x128xf32, #tpu.memory_space<vmem>>, vector<8x128xf32>
    %c0_4 = arith.constant 0 : index
    %c0_5 = arith.constant 0 : index
    %5 = vector.load %arg5[%c0_4, %c0_5] : memref<8x128xf32, #tpu.memory_space<vmem>>, vector<8x128xf32>
    %c0_i32_6 = arith.constant 0 : i32
    %6 = arith.index_cast %c0_i32_6 : i32 to index
    %c0_7 = arith.constant 0 : index
    %c0_8 = arith.constant 0 : index
    %7 = vector.load %arg1[%6, %c0_7, %c0_8] : memref<8x8x512xf32, #tpu.memory_space<vmem>>, vector<1x8x512xf32>
    %8 = vector.shape_cast %7 : vector<1x8x512xf32> to vector<8x512xf32>
    %cst = arith.constant dense<0.000000e+00> : vector<8x512xf32>
    %9 = tpu.matmul %4, %3, %cst {dimension_numbers = #tpu.dot_dimension_numbers<[1], [0], [0], [1], [0, 0, 1, 1], [], []>} : vector<8x128xf32>, vector<128x512xf32>, vector<8x512xf32> -> vector<8x512xf32>
    %10 = arith.addf %8, %9 : vector<8x512xf32>
    %11 = math.tanh %10 : vector<8x512xf32>
    %12 = vector.extract_strided_slice %11 {offsets = [0, 0], sizes = [8, 384], strides = [1, 1]} : vector<8x512xf32> to vector<8x384xf32>
    %cst_9 = arith.constant 5.000000e-01 : f32
    %13 = vector.broadcast %cst_9 : f32 to vector<8x384xf32>
    %14 = arith.mulf %13, %12 : vector<8x384xf32>
    %cst_10 = arith.constant 5.000000e-01 : f32
    %15 = vector.broadcast %cst_10 : f32 to vector<8x384xf32>
    %16 = arith.addf %14, %15 : vector<8x384xf32>
    %17 = vector.extract_strided_slice %16 {offsets = [0, 0], sizes = [8, 128], strides = [1, 1]} : vector<8x384xf32> to vector<8x128xf32>
    %18 = vector.extract_strided_slice %16 {offsets = [0, 128], sizes = [8, 128], strides = [1, 1]} : vector<8x384xf32> to vector<8x128xf32>
    %19 = vector.extract_strided_slice %16 {offsets = [0, 256], sizes = [8, 128], strides = [1, 1]} : vector<8x384xf32> to vector<8x128xf32>
    %20 = vector.extract_strided_slice %11 {offsets = [0, 384], sizes = [8, 128], strides = [1, 1]} : vector<8x512xf32> to vector<8x128xf32>
    %21 = arith.mulf %18, %5 : vector<8x128xf32>
    %22 = arith.mulf %17, %20 : vector<8x128xf32>
    %23 = arith.addf %21, %22 : vector<8x128xf32>
    %24 = math.tanh %23 : vector<8x128xf32>
    %25 = arith.mulf %19, %24 : vector<8x128xf32>
    %26 = arith.index_cast %c0_i32_6 : i32 to index
    %c0_11 = arith.constant 0 : index
    %c0_12 = arith.constant 0 : index
    %27 = vector.load %arg3[%26, %c0_11, %c0_12] : memref<8x8x128xf32, #tpu.memory_space<vmem>>, vector<1x8x128xf32>
    %28 = vector.shape_cast %27 : vector<1x8x128xf32> to vector<8x128xf32>
    %29 = vector.shape_cast %25 : vector<8x128xf32> to vector<1x8x128xf32>
    tpu.vector_store %arg3[%26, %c0_11, %c0_12], %29 {strides = array<i32>} : memref<8x8x128xf32, #tpu.memory_space<vmem>>, vector<1x8x128xf32>,
    %c1_i32 = arith.constant 1 : i32
    %30 = arith.index_cast %c1_i32 : i32 to index
    %c0_13 = arith.constant 0 : index
    %c0_14 = arith.constant 0 : index
    %31 = vector.load %arg1[%30, %c0_13, %c0_14] : memref<8x8x512xf32, #tpu.memory_space<vmem>>, vector<1x8x512xf32>
    %32 = vector.shape_cast %31 : vector<1x8x512xf32> to vector<8x512xf32>
    %cst_15 = arith.constant dense<0.000000e+00> : vector<8x512xf32>
    %33 = tpu.matmul %25, %3, %cst_15 {dimension_numbers = #tpu.dot_dimension_numbers<[1], [0], [0], [1], [0, 0, 1, 1], [], []>} : vector<8x128xf32>, vector<128x512xf32>, vector<8x512xf32> -> vector<8x512xf32>
    %34 = arith.addf %32, %33 : vector<8x512xf32>
    %35 = math.tanh %34 : vector<8x512xf32>
    %36 = vector.extract_strided_slice %35 {offsets = [0, 0], sizes = [8, 384], strides = [1, 1]} : vector<8x512xf32> to vector<8x384xf32>
    %cst_16 = arith.constant 5.000000e-01 : f32
    %37 = vector.broadcast %cst_16 : f32 to vector<8x384xf32>
    %38 = arith.mulf %37, %36 : vector<8x384xf32>
    %cst_17 = arith.constant 5.000000e-01 : f32
    %39 = vector.broadcast %cst_17 : f32 to vector<8x384xf32>
    %40 = arith.addf %38, %39 : vector<8x384xf32>
    %41 = vector.extract_strided_slice %40 {offsets = [0, 0], sizes = [8, 128], strides = [1, 1]} : vector<8x384xf32> to vector<8x128xf32>
    %42 = vector.extract_strided_slice %40 {offsets = [0, 128], sizes = [8, 128], strides = [1, 1]} : vector<8x384xf32> to vector<8x128xf32>
    %43 = vector.extract_strided_slice %40 {offsets = [0, 256], sizes = [8, 128], strides = [1, 1]} : vector<8x384xf32> to vector<8x128xf32>
    %44 = vector.extract_strided_slice %35 {offsets = [0, 384], sizes = [8, 128], strides = [1, 1]} : vector<8x512xf32> to vector<8x128xf32>
    %45 = arith.mulf %42, %23 : vector<8x128xf32>
    %46 = arith.mulf %41, %44 : vector<8x128xf32>
    %47 = arith.addf %45, %46 : vector<8x128xf32>
    %48 = math.tanh %47 : vector<8x128xf32>
    %49 = arith.mulf %43, %48 : vector<8x128xf32>
    %50 = arith.index_cast %c1_i32 : i32 to index
    %c0_18 = arith.constant 0 : index
    %c0_19 = arith.constant 0 : index
    %51 = vector.load %arg3[%50, %c0_18, %c0_19] : memref<8x8x128xf32, #tpu.memory_space<vmem>>, vector<1x8x128xf32>
    %52 = vector.shape_cast %51 : vector<1x8x128xf32> to vector<8x128xf32>
    %53 = vector.shape_cast %49 : vector<8x128xf32> to vector<1x8x128xf32>
    tpu.vector_store %arg3[%50, %c0_18, %c0_19], %53 {strides = array<i32>} : memref<8x8x128xf32, #tpu.memory_space<vmem>>, vector<1x8x128xf32>,
    %c2_i32 = arith.constant 2 : i32
    %54 = arith.index_cast %c2_i32 : i32 to index
    %c0_20 = arith.constant 0 : index
    %c0_21 = arith.constant 0 : index
    %55 = vector.load %arg1[%54, %c0_20, %c0_21] : memref<8x8x512xf32, #tpu.memory_space<vmem>>, vector<1x8x512xf32>
    %56 = vector.shape_cast %55 : vector<1x8x512xf32> to vector<8x512xf32>
    %cst_22 = arith.constant dense<0.000000e+00> : vector<8x512xf32>
    %57 = tpu.matmul %49, %3, %cst_22 {dimension_numbers = #tpu.dot_dimension_numbers<[1], [0], [0], [1], [0, 0, 1, 1], [], []>} : vector<8x128xf32>, vector<128x512xf32>, vector<8x512xf32> -> vector<8x512xf32>
    %58 = arith.addf %56, %57 : vector<8x512xf32>
    %59 = math.tanh %58 : vector<8x512xf32>
    %60 = vector.extract_strided_slice %59 {offsets = [0, 0], sizes = [8, 384], strides = [1, 1]} : vector<8x512xf32> to vector<8x384xf32>
    %cst_23 = arith.constant 5.000000e-01 : f32
    %61 = vector.broadcast %cst_23 : f32 to vector<8x384xf32>
    %62 = arith.mulf %61, %60 : vector<8x384xf32>
    %cst_24 = arith.constant 5.000000e-01 : f32
    %63 = vector.broadcast %cst_24 : f32 to vector<8x384xf32>
    %64 = arith.addf %62, %63 : vector<8x384xf32>
    %65 = vector.extract_strided_slice %64 {offsets = [0, 0], sizes = [8, 128], strides = [1, 1]} : vector<8x384xf32> to vector<8x128xf32>
    %66 = vector.extract_strided_slice %64 {offsets = [0, 128], sizes = [8, 128], strides = [1, 1]} : vector<8x384xf32> to vector<8x128xf32>
    %67 = vector.extract_strided_slice %64 {offsets = [0, 256], sizes = [8, 128], strides = [1, 1]} : vector<8x384xf32> to vector<8x128xf32>
    %68 = vector.extract_strided_slice %59 {offsets = [0, 384], sizes = [8, 128], strides = [1, 1]} : vector<8x512xf32> to vector<8x128xf32>
    %69 = arith.mulf %66, %47 : vector<8x128xf32>
    %70 = arith.mulf %65, %68 : vector<8x128xf32>
    %71 = arith.addf %69, %70 : vector<8x128xf32>
    %72 = math.tanh %71 : vector<8x128xf32>
    %73 = arith.mulf %67, %72 : vector<8x128xf32>
    %74 = arith.index_cast %c2_i32 : i32 to index
    %c0_25 = arith.constant 0 : index
    %c0_26 = arith.constant 0 : index
    %75 = vector.load %arg3[%74, %c0_25, %c0_26] : memref<8x8x128xf32, #tpu.memory_space<vmem>>, vector<1x8x128xf32>
    %76 = vector.shape_cast %75 : vector<1x8x128xf32> to vector<8x128xf32>
    %77 = vector.shape_cast %73 : vector<8x128xf32> to vector<1x8x128xf32>
    tpu.vector_store %arg3[%74, %c0_25, %c0_26], %77 {strides = array<i32>} : memref<8x8x128xf32, #tpu.memory_space<vmem>>, vector<1x8x128xf32>,
    %c3_i32 = arith.constant 3 : i32
    %78 = arith.index_cast %c3_i32 : i32 to index
    %c0_27 = arith.constant 0 : index
    %c0_28 = arith.constant 0 : index
    %79 = vector.load %arg1[%78, %c0_27, %c0_28] : memref<8x8x512xf32, #tpu.memory_space<vmem>>, vector<1x8x512xf32>
    %80 = vector.shape_cast %79 : vector<1x8x512xf32> to vector<8x512xf32>
    %cst_29 = arith.constant dense<0.000000e+00> : vector<8x512xf32>
    %81 = tpu.matmul %73, %3, %cst_29 {dimension_numbers = #tpu.dot_dimension_numbers<[1], [0], [0], [1], [0, 0, 1, 1], [], []>} : vector<8x128xf32>, vector<128x512xf32>, vector<8x512xf32> -> vector<8x512xf32>
    %82 = arith.addf %80, %81 : vector<8x512xf32>
    %83 = math.tanh %82 : vector<8x512xf32>
    %84 = vector.extract_strided_slice %83 {offsets = [0, 0], sizes = [8, 384], strides = [1, 1]} : vector<8x512xf32> to vector<8x384xf32>
    %cst_30 = arith.constant 5.000000e-01 : f32
    %85 = vector.broadcast %cst_30 : f32 to vector<8x384xf32>
    %86 = arith.mulf %85, %84 : vector<8x384xf32>
    %cst_31 = arith.constant 5.000000e-01 : f32
    %87 = vector.broadcast %cst_31 : f32 to vector<8x384xf32>
    %88 = arith.addf %86, %87 : vector<8x384xf32>
    %89 = vector.extract_strided_slice %88 {offsets = [0, 0], sizes = [8, 128], strides = [1, 1]} : vector<8x384xf32> to vector<8x128xf32>
    %90 = vector.extract_strided_slice %88 {offsets = [0, 128], sizes = [8, 128], strides = [1, 1]} : vector<8x384xf32> to vector<8x128xf32>
    %91 = vector.extract_strided_slice %88 {offsets = [0, 256], sizes = [8, 128], strides = [1, 1]} : vector<8x384xf32> to vector<8x128xf32>
    %92 = vector.extract_strided_slice %83 {offsets = [0, 384], sizes = [8, 128], strides = [1, 1]} : vector<8x512xf32> to vector<8x128xf32>
    %93 = arith.mulf %90, %71 : vector<8x128xf32>
    %94 = arith.mulf %89, %92 : vector<8x128xf32>
    %95 = arith.addf %93, %94 : vector<8x128xf32>
    %96 = math.tanh %95 : vector<8x128xf32>
    %97 = arith.mulf %91, %96 : vector<8x128xf32>
    %98 = arith.index_cast %c3_i32 : i32 to index
    %c0_32 = arith.constant 0 : index
    %c0_33 = arith.constant 0 : index
    %99 = vector.load %arg3[%98, %c0_32, %c0_33] : memref<8x8x128xf32, #tpu.memory_space<vmem>>, vector<1x8x128xf32>
    %100 = vector.shape_cast %99 : vector<1x8x128xf32> to vector<8x128xf32>
    %101 = vector.shape_cast %97 : vector<8x128xf32> to vector<1x8x128xf32>
    tpu.vector_store %arg3[%98, %c0_32, %c0_33], %101 {strides = array<i32>} : memref<8x8x128xf32, #tpu.memory_space<vmem>>, vector<1x8x128xf32>,
    %c4_i32 = arith.constant 4 : i32
    %102 = arith.index_cast %c4_i32 : i32 to index
    %c0_34 = arith.constant 0 : index
    %c0_35 = arith.constant 0 : index
    %103 = vector.load %arg1[%102, %c0_34, %c0_35] : memref<8x8x512xf32, #tpu.memory_space<vmem>>, vector<1x8x512xf32>
    %104 = vector.shape_cast %103 : vector<1x8x512xf32> to vector<8x512xf32>
    %cst_36 = arith.constant dense<0.000000e+00> : vector<8x512xf32>
    %105 = tpu.matmul %97, %3, %cst_36 {dimension_numbers = #tpu.dot_dimension_numbers<[1], [0], [0], [1], [0, 0, 1, 1], [], []>} : vector<8x128xf32>, vector<128x512xf32>, vector<8x512xf32> -> vector<8x512xf32>
    %106 = arith.addf %104, %105 : vector<8x512xf32>
    %107 = math.tanh %106 : vector<8x512xf32>
    %108 = vector.extract_strided_slice %107 {offsets = [0, 0], sizes = [8, 384], strides = [1, 1]} : vector<8x512xf32> to vector<8x384xf32>
    %cst_37 = arith.constant 5.000000e-01 : f32
    %109 = vector.broadcast %cst_37 : f32 to vector<8x384xf32>
    %110 = arith.mulf %109, %108 : vector<8x384xf32>
    %cst_38 = arith.constant 5.000000e-01 : f32
    %111 = vector.broadcast %cst_38 : f32 to vector<8x384xf32>
    %112 = arith.addf %110, %111 : vector<8x384xf32>
    %113 = vector.extract_strided_slice %112 {offsets = [0, 0], sizes = [8, 128], strides = [1, 1]} : vector<8x384xf32> to vector<8x128xf32>
    %114 = vector.extract_strided_slice %112 {offsets = [0, 128], sizes = [8, 128], strides = [1, 1]} : vector<8x384xf32> to vector<8x128xf32>
    %115 = vector.extract_strided_slice %112 {offsets = [0, 256], sizes = [8, 128], strides = [1, 1]} : vector<8x384xf32> to vector<8x128xf32>
    %116 = vector.extract_strided_slice %107 {offsets = [0, 384], sizes = [8, 128], strides = [1, 1]} : vector<8x512xf32> to vector<8x128xf32>
    %117 = arith.mulf %114, %95 : vector<8x128xf32>
    %118 = arith.mulf %113, %116 : vector<8x128xf32>
    %119 = arith.addf %117, %118 : vector<8x128xf32>
    %120 = math.tanh %119 : vector<8x128xf32>
    %121 = arith.mulf %115, %120 : vector<8x128xf32>
    %122 = arith.index_cast %c4_i32 : i32 to index
    %c0_39 = arith.constant 0 : index
    %c0_40 = arith.constant 0 : index
    %123 = vector.load %arg3[%122, %c0_39, %c0_40] : memref<8x8x128xf32, #tpu.memory_space<vmem>>, vector<1x8x128xf32>
    %124 = vector.shape_cast %123 : vector<1x8x128xf32> to vector<8x128xf32>
    %125 = vector.shape_cast %121 : vector<8x128xf32> to vector<1x8x128xf32>
    tpu.vector_store %arg3[%122, %c0_39, %c0_40], %125 {strides = array<i32>} : memref<8x8x128xf32, #tpu.memory_space<vmem>>, vector<1x8x128xf32>,
    %c5_i32 = arith.constant 5 : i32
    %126 = arith.index_cast %c5_i32 : i32 to index
    %c0_41 = arith.constant 0 : index
    %c0_42 = arith.constant 0 : index
    %127 = vector.load %arg1[%126, %c0_41, %c0_42] : memref<8x8x512xf32, #tpu.memory_space<vmem>>, vector<1x8x512xf32>
    %128 = vector.shape_cast %127 : vector<1x8x512xf32> to vector<8x512xf32>
    %cst_43 = arith.constant dense<0.000000e+00> : vector<8x512xf32>
    %129 = tpu.matmul %121, %3, %cst_43 {dimension_numbers = #tpu.dot_dimension_numbers<[1], [0], [0], [1], [0, 0, 1, 1], [], []>} : vector<8x128xf32>, vector<128x512xf32>, vector<8x512xf32> -> vector<8x512xf32>
    %130 = arith.addf %128, %129 : vector<8x512xf32>
    %131 = math.tanh %130 : vector<8x512xf32>
    %132 = vector.extract_strided_slice %131 {offsets = [0, 0], sizes = [8, 384], strides = [1, 1]} : vector<8x512xf32> to vector<8x384xf32>
    %cst_44 = arith.constant 5.000000e-01 : f32
    %133 = vector.broadcast %cst_44 : f32 to vector<8x384xf32>
    %134 = arith.mulf %133, %132 : vector<8x384xf32>
    %cst_45 = arith.constant 5.000000e-01 : f32
    %135 = vector.broadcast %cst_45 : f32 to vector<8x384xf32>
    %136 = arith.addf %134, %135 : vector<8x384xf32>
    %137 = vector.extract_strided_slice %136 {offsets = [0, 0], sizes = [8, 128], strides = [1, 1]} : vector<8x384xf32> to vector<8x128xf32>
    %138 = vector.extract_strided_slice %136 {offsets = [0, 128], sizes = [8, 128], strides = [1, 1]} : vector<8x384xf32> to vector<8x128xf32>
    %139 = vector.extract_strided_slice %136 {offsets = [0, 256], sizes = [8, 128], strides = [1, 1]} : vector<8x384xf32> to vector<8x128xf32>
    %140 = vector.extract_strided_slice %131 {offsets = [0, 384], sizes = [8, 128], strides = [1, 1]} : vector<8x512xf32> to vector<8x128xf32>
    %141 = arith.mulf %138, %119 : vector<8x128xf32>
    %142 = arith.mulf %137, %140 : vector<8x128xf32>
    %143 = arith.addf %141, %142 : vector<8x128xf32>
    %144 = math.tanh %143 : vector<8x128xf32>
    %145 = arith.mulf %139, %144 : vector<8x128xf32>
    %146 = arith.index_cast %c5_i32 : i32 to index
    %c0_46 = arith.constant 0 : index
    %c0_47 = arith.constant 0 : index
    %147 = vector.load %arg3[%146, %c0_46, %c0_47] : memref<8x8x128xf32, #tpu.memory_space<vmem>>, vector<1x8x128xf32>
    %148 = vector.shape_cast %147 : vector<1x8x128xf32> to vector<8x128xf32>
    %149 = vector.shape_cast %145 : vector<8x128xf32> to vector<1x8x128xf32>
    tpu.vector_store %arg3[%146, %c0_46, %c0_47], %149 {strides = array<i32>} : memref<8x8x128xf32, #tpu.memory_space<vmem>>, vector<1x8x128xf32>,
    %c6_i32 = arith.constant 6 : i32
    %150 = arith.index_cast %c6_i32 : i32 to index
    %c0_48 = arith.constant 0 : index
    %c0_49 = arith.constant 0 : index
    %151 = vector.load %arg1[%150, %c0_48, %c0_49] : memref<8x8x512xf32, #tpu.memory_space<vmem>>, vector<1x8x512xf32>
    %152 = vector.shape_cast %151 : vector<1x8x512xf32> to vector<8x512xf32>
    %cst_50 = arith.constant dense<0.000000e+00> : vector<8x512xf32>
    %153 = tpu.matmul %145, %3, %cst_50 {dimension_numbers = #tpu.dot_dimension_numbers<[1], [0], [0], [1], [0, 0, 1, 1], [], []>} : vector<8x128xf32>, vector<128x512xf32>, vector<8x512xf32> -> vector<8x512xf32>
    %154 = arith.addf %152, %153 : vector<8x512xf32>
    %155 = math.tanh %154 : vector<8x512xf32>
    %156 = vector.extract_strided_slice %155 {offsets = [0, 0], sizes = [8, 384], strides = [1, 1]} : vector<8x512xf32> to vector<8x384xf32>
    %cst_51 = arith.constant 5.000000e-01 : f32
    %157 = vector.broadcast %cst_51 : f32 to vector<8x384xf32>
    %158 = arith.mulf %157, %156 : vector<8x384xf32>
    %cst_52 = arith.constant 5.000000e-01 : f32
    %159 = vector.broadcast %cst_52 : f32 to vector<8x384xf32>
    %160 = arith.addf %158, %159 : vector<8x384xf32>
    %161 = vector.extract_strided_slice %160 {offsets = [0, 0], sizes = [8, 128], strides = [1, 1]} : vector<8x384xf32> to vector<8x128xf32>
    %162 = vector.extract_strided_slice %160 {offsets = [0, 128], sizes = [8, 128], strides = [1, 1]} : vector<8x384xf32> to vector<8x128xf32>
    %163 = vector.extract_strided_slice %160 {offsets = [0, 256], sizes = [8, 128], strides = [1, 1]} : vector<8x384xf32> to vector<8x128xf32>
    %164 = vector.extract_strided_slice %155 {offsets = [0, 384], sizes = [8, 128], strides = [1, 1]} : vector<8x512xf32> to vector<8x128xf32>
    %165 = arith.mulf %162, %143 : vector<8x128xf32>
    %166 = arith.mulf %161, %164 : vector<8x128xf32>
    %167 = arith.addf %165, %166 : vector<8x128xf32>
    %168 = math.tanh %167 : vector<8x128xf32>
    %169 = arith.mulf %163, %168 : vector<8x128xf32>
    %170 = arith.index_cast %c6_i32 : i32 to index
    %c0_53 = arith.constant 0 : index
    %c0_54 = arith.constant 0 : index
    %171 = vector.load %arg3[%170, %c0_53, %c0_54] : memref<8x8x128xf32, #tpu.memory_space<vmem>>, vector<1x8x128xf32>
    %172 = vector.shape_cast %171 : vector<1x8x128xf32> to vector<8x128xf32>
    %173 = vector.shape_cast %169 : vector<8x128xf32> to vector<1x8x128xf32>
    tpu.vector_store %arg3[%170, %c0_53, %c0_54], %173 {strides = array<i32>} : memref<8x8x128xf32, #tpu.memory_space<vmem>>, vector<1x8x128xf32>,
    %c7_i32 = arith.constant 7 : i32
    %174 = arith.index_cast %c7_i32 : i32 to index
    %c0_55 = arith.constant 0 : index
    %c0_56 = arith.constant 0 : index
    %175 = vector.load %arg1[%174, %c0_55, %c0_56] : memref<8x8x512xf32, #tpu.memory_space<vmem>>, vector<1x8x512xf32>
    %176 = vector.shape_cast %175 : vector<1x8x512xf32> to vector<8x512xf32>
    %cst_57 = arith.constant dense<0.000000e+00> : vector<8x512xf32>
    %177 = tpu.matmul %169, %3, %cst_57 {dimension_numbers = #tpu.dot_dimension_numbers<[1], [0], [0], [1], [0, 0, 1, 1], [], []>} : vector<8x128xf32>, vector<128x512xf32>, vector<8x512xf32> -> vector<8x512xf32>
    %178 = arith.addf %176, %177 : vector<8x512xf32>
    %179 = math.tanh %178 : vector<8x512xf32>
    %180 = vector.extract_strided_slice %179 {offsets = [0, 0], sizes = [8, 384], strides = [1, 1]} : vector<8x512xf32> to vector<8x384xf32>
    %cst_58 = arith.constant 5.000000e-01 : f32
    %181 = vector.broadcast %cst_58 : f32 to vector<8x384xf32>
    %182 = arith.mulf %181, %180 : vector<8x384xf32>
    %cst_59 = arith.constant 5.000000e-01 : f32
    %183 = vector.broadcast %cst_59 : f32 to vector<8x384xf32>
    %184 = arith.addf %182, %183 : vector<8x384xf32>
    %185 = vector.extract_strided_slice %184 {offsets = [0, 0], sizes = [8, 128], strides = [1, 1]} : vector<8x384xf32> to vector<8x128xf32>
    %186 = vector.extract_strided_slice %184 {offsets = [0, 128], sizes = [8, 128], strides = [1, 1]} : vector<8x384xf32> to vector<8x128xf32>
    %187 = vector.extract_strided_slice %184 {offsets = [0, 256], sizes = [8, 128], strides = [1, 1]} : vector<8x384xf32> to vector<8x128xf32>
    %188 = vector.extract_strided_slice %179 {offsets = [0, 384], sizes = [8, 128], strides = [1, 1]} : vector<8x512xf32> to vector<8x128xf32>
    %189 = arith.mulf %186, %167 : vector<8x128xf32>
    %190 = arith.mulf %185, %188 : vector<8x128xf32>
    %191 = arith.addf %189, %190 : vector<8x128xf32>
    %192 = math.tanh %191 : vector<8x128xf32>
    %193 = arith.mulf %187, %192 : vector<8x128xf32>
    %194 = arith.index_cast %c7_i32 : i32 to index
    %c0_60 = arith.constant 0 : index
    %c0_61 = arith.constant 0 : index
    %195 = vector.load %arg3[%194, %c0_60, %c0_61] : memref<8x8x128xf32, #tpu.memory_space<vmem>>, vector<1x8x128xf32>
    %196 = vector.shape_cast %195 : vector<1x8x128xf32> to vector<8x128xf32>
    %197 = vector.shape_cast %193 : vector<8x128xf32> to vector<1x8x128xf32>
    tpu.vector_store %arg3[%194, %c0_60, %c0_61], %197 {strides = array<i32>} : memref<8x8x128xf32, #tpu.memory_space<vmem>>, vector<1x8x128xf32>,
    %c8_i32 = arith.constant 8 : i32
    %c0_62 = arith.constant 0 : index
    %c0_63 = arith.constant 0 : index
    %198 = vector.load %arg4[%c0_62, %c0_63] : memref<8x128xf32, #tpu.memory_space<vmem>>, vector<8x128xf32>
    tpu.vector_store %arg4[%c0_62, %c0_63], %193 {strides = array<i32>} : memref<8x128xf32, #tpu.memory_space<vmem>>, vector<8x128xf32>,
    %c0_64 = arith.constant 0 : index
    %c0_65 = arith.constant 0 : index
    %199 = vector.load %arg5[%c0_64, %c0_65] : memref<8x128xf32, #tpu.memory_space<vmem>>, vector<8x128xf32>
    tpu.vector_store %arg5[%c0_64, %c0_65], %191 {strides = array<i32>} : memref<8x128xf32, #tpu.memory_space<vmem>>, vector<8x128xf32>,
    return
  }
  func.func @transform_0(%arg0: i32) -> (i32, i32, i32) {
    %c0_i32 = arith.constant 0 : i32
    %c0_i32_0 = arith.constant 0 : i32
    %c0_i32_1 = arith.constant 0 : i32
    return %arg0, %c0_i32, %c0_i32_0 : i32, i32, i32
  }
  func.func @transform_1(%arg0: i32) -> (i32, i32) {
    %c0_i32 = arith.constant 0 : i32
    %c0_i32_0 = arith.constant 0 : i32
    %c0_i32_1 = arith.constant 0 : i32
    return %c0_i32, %c0_i32_0 : i32, i32
  }
  func.func @transform_2(%arg0: i32) -> (i32, i32, i32) {
    %c0_i32 = arith.constant 0 : i32
    %c0_i32_0 = arith.constant 0 : i32
    %c0_i32_1 = arith.constant 0 : i32
    return %arg0, %c0_i32, %c0_i32_0 : i32, i32, i32
  }
}

</mosaic_0001>

<llo_original>
// kernel: lstm_conv_forward.1
$region0: #{lstm_conv_forward.1}
  #allocation0 [shape = 'u32[]', space=smem, size = 0x4, offset = 0x4, fixed_abs, tag = 'smem constant byte address 0x4 - core index']
  #allocation1 [shape = 'u32[144,128]{1,0:T(1,128)}', space=vmem, size = 0x12000, scoped, tag = 'internal scratch']
  #allocation2 [shape = 'f32[8,128]{1,0:T(8,128)}', space=vmem, size = 0x1000, scoped, tag = 'scratch operand']
  #allocation3 [shape = 'f32[8,128]{1,0:T(8,128)}', space=vmem, size = 0x1000, scoped, tag = 'scratch operand']
  %s0 = inlined_call_operand.vmem [shape: f32[8,8,512], index: 0, kind: input, shape index: {}]
  %s1 = inlined_call_operand.vmem [shape: f32[128,512], index: 1, kind: input, shape index: {}]
  %s2 = inlined_call_operand.vmem [shape: f32[8,8,128], index: 2, kind: output, shape index: {}]
  %s3 = sld [smem:[#allocation0]]
  $region22: #{lstm_conv_forward.1} parent=0
    _
  %s5 = ssub.s32 1, %s3
  %s6 = scalar_select 0, %s5, %s3
  // Predicated region
  $region2: #{lstm_conv_forward.1} parent=0 // pred_check
    _
  $region3: #{lstm_conv_forward.1} parent=0 // pred_check_branch
    %8 = sbr.rel (0) target = $region5
  $region4: #{lstm_conv_forward.1} parent=0 // pred_region
    _
  $region5: #{lstm_conv_forward.1} parent=0 // pred_fallthru
    _
  // Predicated region
  $region6: #{lstm_conv_forward.1} parent=0 // pred_check
    _
  $region7: #{lstm_conv_forward.1} parent=0 // pred_check_branch
    %10 = sbr.rel (0) target = $region9
  $region8: #{lstm_conv_forward.1} parent=0 // pred_region
    _
  $region9: #{lstm_conv_forward.1} parent=0 // pred_fallthru
    _
  %p11 = scmp.eq.s32.totalorder 0, 0
  // Predicated region
  $region10: #{lstm_conv_forward.1} parent=0 // pred_check
    %p12 = pneg %p11
  $region11: #{lstm_conv_forward.1} parent=0 // pred_check_branch
    %14 = sbr.rel (%p12) target = $region13
  $region12: #{lstm_conv_forward.1} parent=0 // pred_region
    %15 = vst [vmem:[#allocation2] sm:$0xff] 0.0
    %16 = vst [vmem:[#allocation3] sm:$0xff] 0.0
  $region13: #{lstm_conv_forward.1} parent=0 // pred_fallthru
    _
  %v17 = vld [vmem:[%s1] sm:$0xff]
  %v18 = vld [vmem:[%s1 + $0x8] sm:$0xff]
  %v19 = vld [vmem:[%s1 + $0x10] sm:$0xff]
  %v20 = vld [vmem:[%s1 + $0x18] sm:$0xff]
  %v21 = vld [vmem:[%s1 + $0x20] sm:$0xff]
  %v22 = vld [vmem:[%s1 + $0x28] sm:$0xff]
  %v23 = vld [vmem:[%s1 + $0x30] sm:$0xff]
  %v24 = vld [vmem:[%s1 + $0x38] sm:$0xff]
  %v25 = vld [vmem:[%s1 + $0x40] sm:$0xff]
  %v26 = vld [vmem:[%s1 + $0x48] sm:$0xff]
  %v27 = vld [vmem:[%s1 + $0x50] sm:$0xff]
  %v28 = vld [vmem:[%s1 + $0x58] sm:$0xff]
  %v29 = vld [vmem:[%s1 + $0x60] sm:$0xff]
  %v30 = vld [vmem:[%s1 + $0x68] sm:$0xff]
  %v31 = vld [vmem:[%s1 + $0x70] sm:$0xff]
  %v32 = vld [vmem:[%s1 + $0x78] sm:$0xff]
  %v33 = vld [vmem:[%s1 + $0x80] sm:$0xff]
  %v34 = vld [vmem:[%s1 + $0x88] sm:$0xff]
  %v35 = vld [vmem:[%s1 + $0x90] sm:$0xff]
  %v36 = vld [vmem:[%s1 + $0x98] sm:$0xff]
  %v37 = vld [vmem:[%s1 + $0xa0] sm:$0xff]
  %v38 = vld [vmem:[%s1 + $0xa8] sm:$0xff]
  %v39 = vld [vmem:[%s1 + $0xb0] sm:$0xff]
  %v40 = vld [vmem:[%s1 + $0xb8] sm:$0xff]
  %v41 = vld [vmem:[%s1 + $0xc0] sm:$0xff]
  %v42 = vld [vmem:[%s1 + $0xc8] sm:$0xff]
  %v43 = vld [vmem:[%s1 + $0xd0] sm:$0xff]
  %v44 = vld [vmem:[%s1 + $0xd8] sm:$0xff]
  %v45 = vld [vmem:[%s1 + $0xe0] sm:$0xff]
  %v46 = vld [vmem:[%s1 + $0xe8] sm:$0xff]
  %v47 = vld [vmem:[%s1 + $0xf0] sm:$0xff]
  %v48 = vld [vmem:[%s1 + $0xf8] sm:$0xff]
  %v49 = vld [vmem:[%s1 + $0x100] sm:$0xff]
  %v50 = vld [vmem:[%s1 + $0x108] sm:$0xff]
  %v51 = vld [vmem:[%s1 + $0x110] sm:$0xff]
  %v52 = vld [vmem:[%s1 + $0x118] sm:$0xff]
  %v53 = vld [vmem:[%s1 + $0x120] sm:$0xff]
  %v54 = vld [vmem:[%s1 + $0x128] sm:$0xff]
  %v55 = vld [vmem:[%s1 + $0x130] sm:$0xff]
  %v56 = vld [vmem:[%s1 + $0x138] sm:$0xff]
  %v57 = vld [vmem:[%s1 + $0x140] sm:$0xff]
  %v58 = vld [vmem:[%s1 + $0x148] sm:$0xff]
  %v59 = vld [vmem:[%s1 + $0x150] sm:$0xff]
  %v60 = vld [vmem:[%s1 + $0x158] sm:$0xff]
  %v61 = vld [vmem:[%s1 + $0x160] sm:$0xff]
  %v62 = vld [vmem:[%s1 + $0x168] sm:$0xff]
  %v63 = vld [vmem:[%s1 + $0x170] sm:$0xff]
  %v64 = vld [vmem:[%s1 + $0x178] sm:$0xff]
  %v65 = vld [vmem:[%s1 + $0x180] sm:$0xff]
  %v66 = vld [vmem:[%s1 + $0x188] sm:$0xff]
  %v67 = vld [vmem:[%s1 + $0x190] sm:$0xff]
  %v68 = vld [vmem:[%s1 + $0x198] sm:$0xff]
  %v69 = vld [vmem:[%s1 + $0x1a0] sm:$0xff]
  %v70 = vld [vmem:[%s1 + $0x1a8] sm:$0xff]
  %v71 = vld [vmem:[%s1 + $0x1b0] sm:$0xff]
  %v72 = vld [vmem:[%s1 + $0x1b8] sm:$0xff]
  %v73 = vld [vmem:[%s1 + $0x1c0] sm:$0xff]
  %v74 = vld [vmem:[%s1 + $0x1c8] sm:$0xff]
  %v75 = vld [vmem:[%s1 + $0x1d0] sm:$0xff]
  %v76 = vld [vmem:[%s1 + $0x1d8] sm:$0xff]
  %v77 = vld [vmem:[%s1 + $0x1e0] sm:$0xff]
  %v78 = vld [vmem:[%s1 + $0x1e8] sm:$0xff]
  %v79 = vld [vmem:[%s1 + $0x1f0] sm:$0xff]
  %v80 = vld [vmem:[%s1 + $0x1f8] sm:$0xff]
  %v81 = vld [vmem:[#allocation2] sm:$0xff]
  %v82 = vld [vmem:[#allocation3] sm:$0xff]
  %v83 = vld [vmem:[%s0] sm:$0xff]
  %v84 = vld [vmem:[%s0 + $0x8] sm:$0xff]
  %v85 = vld [vmem:[%s0 + $0x10] sm:$0xff]
  %v86 = vld [vmem:[%s0 + $0x18] sm:$0xff]
  %87 = vmatprep.subr.mxu0 %v18
  %88 = vmatpush1.msra.mxu0 %v17
  %89 = vmatprep.subr.mxu0 %v22
  %90 = vmatpush1.msra.mxu0 %v21
  %91 = vmatprep.subr.mxu0 %v26
  %92 = vmatpush1.msra.mxu0 %v25
  %93 = vmatprep.subr.mxu0 %v30
  %94 = vmatpush1.msra.mxu0 %v29
  %95 = vmatprep.subr.mxu0 %v34
  %96 = vmatpush1.msra.mxu0 %v33
  %97 = vmatprep.subr.mxu0 %v38
  %98 = vmatpush1.msra.mxu0 %v37
  %99 = vmatprep.subr.mxu0 %v42
  %100 = vmatpush1.msra.mxu0 %v41
  %101 = vmatprep.subr.mxu0 %v46
  %102 = vmatpush1.msra.mxu0 %v45
  %103 = vmatprep.subr.mxu0 %v50
  %104 = vmatpush1.msra.mxu0 %v49
  %105 = vmatprep.subr.mxu0 %v54
  %106 = vmatpush1.msra.mxu0 %v53
  %107 = vmatprep.subr.mxu0 %v58
  %108 = vmatpush1.msra.mxu0 %v57
  %109 = vmatprep.subr.mxu0 %v62
  %110 = vmatpush1.msra.mxu0 %v61
  %111 = vmatprep.subr.mxu0 %v66
  %112 = vmatpush1.msra.mxu0 %v65
  %113 = vmatprep.subr.mxu0 %v70
  %114 = vmatpush1.msra.mxu0 %v69
  %115 = vmatprep.subr.mxu0 %v74
  %116 = vmatpush1.msra.mxu0 %v73
  %117 = vmatprep.subr.mxu0 %v78
  %118 = vmatpush1.msra.mxu0 %v77
  %119 = vmatprep.subr.mxu0 0.0
  %120 = vmatpush1.msra.mxu0 0.0
  %121 = vmatprep.subr.mxu0 0.0
  %122 = vmatpush1.msra.mxu0 0.0
  %123 = vmatprep.subr.mxu0 0.0
  %124 = vmatpush1.msra.mxu0 0.0
  %125 = vmatprep.subr.mxu0 0.0
  %126 = vmatpush1.msra.mxu0 0.0
  %127 = vmatprep.subr.mxu0 0.0
  %128 = vmatpush1.msra.mxu0 0.0
  %129 = vmatprep.subr.mxu0 0.0
  %130 = vmatpush1.msra.mxu0 0.0
  %131 = vmatprep.subr.mxu0 0.0
  %132 = vmatpush1.msra.mxu0 0.0
  %133 = vmatprep.subr.mxu0 0.0
  %134 = vmatpush1.msra.mxu0 0.0
  %135 = vmatprep.subr.mxu0 0.0
  %136 = vmatpush1.msra.mxu0 0.0
  %137 = vmatprep.subr.mxu0 0.0
  %138 = vmatpush1.msra.mxu0 0.0
  %139 = vmatprep.subr.mxu0 0.0
  %140 = vmatpush1.msra.mxu0 0.0
  %141 = vmatprep.subr.mxu0 0.0
  %142 = vmatpush1.msra.mxu0 0.0
  %143 = vmatprep.subr.mxu0 0.0
  %144 = vmatpush1.msra.mxu0 0.0
  %145 = vmatprep.subr.mxu0 0.0
  %146 = vmatpush1.msra.mxu0 0.0
  %147 = vmatprep.subr.mxu0 0.0
  %148 = vmatpush1.msra.mxu0 0.0
  %149 = vmatprep.subr.mxu0 0.0
  %150 = vmatpush1.msra.mxu0 0.0
  %151 = vmatprep.mubr.f32.mxu0 0.0
  %152 = vmatmul.mubr.f32.gmra.mrb[0].mxu0 %v81
  %v153 = vpop.f32.mrb[0].mxu0
  %v154 = vadd.f32 0.0, %v153
  %v155 = vpop.f32.mrb[0].mxu0
  %v156 = vadd.f32 0.0, %v155
  %157 = vdwg.mxu0
  %158 = vmatprep.subr.mxu0 %v20
  %159 = vmatpush1.msra.mxu0 %v19
  %160 = vmatprep.subr.mxu0 %v24
  %161 = vmatpush1.msra.mxu0 %v23
  %162 = vmatprep.subr.mxu0 %v28
  %163 = vmatpush1.msra.mxu0 %v27
  %164 = vmatprep.subr.mxu0 %v32
  %165 = vmatpush1.msra.mxu0 %v31
  %166 = vmatprep.subr.mxu0 %v36
  %167 = vmatpush1.msra.mxu0 %v35
  %168 = vmatprep.subr.mxu0 %v40
  %169 = vmatpush1.msra.mxu0 %v39
  %170 = vmatprep.subr.mxu0 %v44
  %171 = vmatpush1.msra.mxu0 %v43
  %172 = vmatprep.subr.mxu0 %v48
  %173 = vmatpush1.msra.mxu0 %v47
  %174 = vmatprep.subr.mxu0 %v52
  %175 = vmatpush1.msra.mxu0 %v51
  %176 = vmatprep.subr.mxu0 %v56
  %177 = vmatpush1.msra.mxu0 %v55
  %178 = vmatprep.subr.mxu0 %v60
  %179 = vmatpush1.msra.mxu0 %v59
  %180 = vmatprep.subr.mxu0 %v64
  %181 = vmatpush1.msra.mxu0 %v63
  %182 = vmatprep.subr.mxu0 %v68
  %183 = vmatpush1.msra.mxu0 %v67
  %184 = vmatprep.subr.mxu0 %v72
  %185 = vmatpush1.msra.mxu0 %v71
  %186 = vmatprep.subr.mxu0 %v76
  %187 = vmatpush1.msra.mxu0 %v75
  %188 = vmatprep.subr.mxu0 %v80
  %189 = vmatpush1.msra.mxu0 %v79
  %190 = vmatprep.subr.mxu0 0.0
  %191 = vmatpush1.msra.mxu0 0.0
  %192 = vmatprep.subr.mxu0 0.0
  %193 = vmatpush1.msra.mxu0 0.0
  %194 = vmatprep.subr.mxu0 0.0
  %195 = vmatpush1.msra.mxu0 0.0
  %196 = vmatprep.subr.mxu0 0.0
  %197 = vmatpush1.msra.mxu0 0.0
  %198 = vmatprep.subr.mxu0 0.0
  %199 = vmatpush1.msra.mxu0 0.0
  %200 = vmatprep.subr.mxu0 0.0
  %201 = vmatpush1.msra.mxu0 0.0
  %202 = vmatprep.subr.mxu0 0.0
  %203 = vmatpush1.msra.mxu0 0.0
  %204 = vmatprep.subr.mxu0 0.0
  %205 = vmatpush1.msra.mxu0 0.0
  %206 = vmatprep.subr.mxu0 0.0
  %207 = vmatpush1.msra.mxu0 0.0
  %208 = vmatprep.subr.mxu0 0.0
  %209 = vmatpush1.msra.mxu0 0.0
  %210 = vmatprep.subr.mxu0 0.0
  %211 = vmatpush1.msra.mxu0 0.0
  %212 = vmatprep.subr.mxu0 0.0
  %213 = vmatpush1.msra.mxu0 0.0
  %214 = vmatprep.subr.mxu0 0.0
  %215 = vmatpush1.msra.mxu0 0.0
  %216 = vmatprep.subr.mxu0 0.0
  %217 = vmatpush1.msra.mxu0 0.0
  %218 = vmatprep.subr.mxu0 0.0
  %219 = vmatpush1.msra.mxu0 0.0
  %220 = vmatprep.subr.mxu0 0.0
  %221 = vmatpush1.msra.mxu0 0.0
  %222 = vmatprep.mubr.f32.mxu0 0.0
  %223 = vmatmul.mubr.f32.gmra.mrb[0].mxu0 %v81
  %v224 = vpop.f32.mrb[0].mxu0
  %v225 = vadd.f32 0.0, %v224
  %v226 = vpop.f32.mrb[0].mxu0
  %v227 = vadd.f32 0.0, %v226
  %228 = vdwg.mxu0
  %v229 = vadd.f32 %v83, %v154
  %v230 = vadd.f32 %v84, %v156
  %v231 = vadd.f32 %v85, %v225
  %v232 = vadd.f32 %v86, %v227
  %v233 = vtanh.pop %v229
  %v234 = vtanh.pop %v230
  %v235 = vtanh.pop %v231
  %v236 = vtanh.pop %v232
  %v237 = vmul.f32 %v233, 0.5
  %v238 = vmul.f32 %v234, 0.5
  %v239 = vmul.f32 %v235, 0.5
  %v240 = vadd.f32 %v237, 0.5
  %v241 = vadd.f32 %v238, 0.5
  %v242 = vadd.f32 %v239, 0.5
  %v243 = vmul.f32 %v241, %v82
  %v244 = vmul.f32 %v240, %v236
  %v245 = vadd.f32 %v243, %v244
  %v246 = vtanh.pop %v245
  %v247 = vmul.f32 %v242, %v246
  %248 = vst [vmem:[%s2] sm:$0xff] %v247
  %s249 = scalar_lea.vmem %s0, 32
  %v250 = vld [vmem:[%s249] sm:$0xff]
  %v251 = vld [vmem:[%s249 + $0x8] sm:$0xff]
  %v252 = vld [vmem:[%s249 + $0x10] sm:$0xff]
  %v253 = vld [vmem:[%s249 + $0x18] sm:$0xff]
  %254 = vmatprep.subr.mxu0 %v18
  %255 = vmatpush1.msra.mxu0 %v17
  %256 = vmatprep.subr.mxu0 %v22
  %257 = vmatpush1.msra.mxu0 %v21
  %258 = vmatprep.subr.mxu0 %v26
  %259 = vmatpush1.msra.mxu0 %v25
  %260 = vmatprep.subr.mxu0 %v30
  %261 = vmatpush1.msra.mxu0 %v29
  %262 = vmatprep.subr.mxu0 %v34
  %263 = vmatpush1.msra.mxu0 %v33
  %264 = vmatprep.subr.mxu0 %v38
  %265 = vmatpush1.msra.mxu0 %v37
  %266 = vmatprep.subr.mxu0 %v42
  %267 = vmatpush1.msra.mxu0 %v41
  %268 = vmatprep.subr.mxu0 %v46
  %269 = vmatpush1.msra.mxu0 %v45
  %270 = vmatprep.subr.mxu0 %v50
  %271 = vmatpush1.msra.mxu0 %v49
  %272 = vmatprep.subr.mxu0 %v54
  %273 = vmatpush1.msra.mxu0 %v53
  %274 = vmatprep.subr.mxu0 %v58
  %275 = vmatpush1.msra.mxu0 %v57
  %276 = vmatprep.subr.mxu0 %v62
  %277 = vmatpush1.msra.mxu0 %v61
  %278 = vmatprep.subr.mxu0 %v66
  %279 = vmatpush1.msra.mxu0 %v65
  %280 = vmatprep.subr.mxu0 %v70
  %281 = vmatpush1.msra.mxu0 %v69
  %282 = vmatprep.subr.mxu0 %v74
  %283 = vmatpush1.msra.mxu0 %v73
  %284 = vmatprep.subr.mxu0 %v78
  %285 = vmatpush1.msra.mxu0 %v77
  %286 = vmatprep.subr.mxu0 0.0
  %287 = vmatpush1.msra.mxu0 0.0
  %288 = vmatprep.subr.mxu0 0.0
  %289 = vmatpush1.msra.mxu0 0.0
  %290 = vmatprep.subr.mxu0 0.0
  %291 = vmatpush1.msra.mxu0 0.0
  %292 = vmatprep.subr.mxu0 0.0
  %293 = vmatpush1.msra.mxu0 0.0
  %294 = vmatprep.subr.mxu0 0.0
  %295 = vmatpush1.msra.mxu0 0.0
  %296 = vmatprep.subr.mxu0 0.0
  %297 = vmatpush1.msra.mxu0 0.0
  %298 = vmatprep.subr.mxu0 0.0
  %299 = vmatpush1.msra.mxu0 0.0
  %300 = vmatprep.subr.mxu0 0.0
  %301 = vmatpush1.msra.mxu0 0.0
  %302 = vmatprep.subr.mxu0 0.0
  %303 = vmatpush1.msra.mxu0 0.0
  %304 = vmatprep.subr.mxu0 0.0
  %305 = vmatpush1.msra.mxu0 0.0
  %306 = vmatprep.subr.mxu0 0.0
  %307 = vmatpush1.msra.mxu0 0.0
  %308 = vmatprep.subr.mxu0 0.0
  %309 = vmatpush1.msra.mxu0 0.0
  %310 = vmatprep.subr.mxu0 0.0
  %311 = vmatpush1.msra.mxu0 0.0
  %312 = vmatprep.subr.mxu0 0.0
  %313 = vmatpush1.msra.mxu0 0.0
  %314 = vmatprep.subr.mxu0 0.0
  %315 = vmatpush1.msra.mxu0 0.0
  %316 = vmatprep.subr.mxu0 0.0
  %317 = vmatpush1.msra.mxu0 0.0
  %318 = vmatprep.mubr.f32.mxu0 0.0
  %319 = vmatmul.mubr.f32.gmra.mrb[0].mxu0 %v247
  %v320 = vpop.f32.mrb[0].mxu0
  %v321 = vadd.f32 0.0, %v320
  %v322 = vpop.f32.mrb[0].mxu0
  %v323 = vadd.f32 0.0, %v322
  %324 = vdwg.mxu0
  %325 = vmatprep.subr.mxu0 %v20
  %326 = vmatpush1.msra.mxu0 %v19
  %327 = vmatprep.subr.mxu0 %v24
  %328 = vmatpush1.msra.mxu0 %v23
  %329 = vmatprep.subr.mxu0 %v28
  %330 = vmatpush1.msra.mxu0 %v27
  %331 = vmatprep.subr.mxu0 %v32
  %332 = vmatpush1.msra.mxu0 %v31
  %333 = vmatprep.subr.mxu0 %v36
  %334 = vmatpush1.msra.mxu0 %v35
  %335 = vmatprep.subr.mxu0 %v40
  %336 = vmatpush1.msra.mxu0 %v39
  %337 = vmatprep.subr.mxu0 %v44
  %338 = vmatpush1.msra.mxu0 %v43
  %339 = vmatprep.subr.mxu0 %v48
  %340 = vmatpush1.msra.mxu0 %v47
  %341 = vmatprep.subr.mxu0 %v52
  %342 = vmatpush1.msra.mxu0 %v51
  %343 = vmatprep.subr.mxu0 %v56
  %344 = vmatpush1.msra.mxu0 %v55
  %345 = vmatprep.subr.mxu0 %v60
  %346 = vmatpush1.msra.mxu0 %v59
  %347 = vmatprep.subr.mxu0 %v64
  %348 = vmatpush1.msra.mxu0 %v63
  %349 = vmatprep.subr.mxu0 %v68
  %350 = vmatpush1.msra.mxu0 %v67
  %351 = vmatprep.subr.mxu0 %v72
  %352 = vmatpush1.msra.mxu0 %v71
  %353 = vmatprep.subr.mxu0 %v76
  %354 = vmatpush1.msra.mxu0 %v75
  %355 = vmatprep.subr.mxu0 %v80
  %356 = vmatpush1.msra.mxu0 %v79
  %357 = vmatprep.subr.mxu0 0.0
  %358 = vmatpush1.msra.mxu0 0.0
  %359 = vmatprep.subr.mxu0 0.0
  %360 = vmatpush1.msra.mxu0 0.0
  %361 = vmatprep.subr.mxu0 0.0
  %362 = vmatpush1.msra.mxu0 0.0
  %363 = vmatprep.subr.mxu0 0.0
  %364 = vmatpush1.msra.mxu0 0.0
  %365 = vmatprep.subr.mxu0 0.0
  %366 = vmatpush1.msra.mxu0 0.0
  %367 = vmatprep.subr.mxu0 0.0
  %368 = vmatpush1.msra.mxu0 0.0
  %369 = vmatprep.subr.mxu0 0.0
  %370 = vmatpush1.msra.mxu0 0.0
  %371 = vmatprep.subr.mxu0 0.0
  %372 = vmatpush1.msra.mxu0 0.0
  %373 = vmatprep.subr.mxu0 0.0
  %374 = vmatpush1.msra.mxu0 0.0
  %375 = vmatprep.subr.mxu0 0.0
  %376 = vmatpush1.msra.mxu0 0.0
  %377 = vmatprep.subr.mxu0 0.0
  %378 = vmatpush1.msra.mxu0 0.0
  %379 = vmatprep.subr.mxu0 0.0
  %380 = vmatpush1.msra.mxu0 0.0
  %381 = vmatprep.subr.mxu0 0.0
  %382 = vmatpush1.msra.mxu0 0.0
  %383 = vmatprep.subr.mxu0 0.0
  %384 = vmatpush1.msra.mxu0 0.0
  %385 = vmatprep.subr.mxu0 0.0
  %386 = vmatpush1.msra.mxu0 0.0
  %387 = vmatprep.subr.mxu0 0.0
  %388 = vmatpush1.msra.mxu0 0.0
  %389 = vmatprep.mubr.f32.mxu0 0.0
  %390 = vmatmul.mubr.f32.gmra.mrb[0].mxu0 %v247
  %v391 = vpop.f32.mrb[0].mxu0
  %v392 = vadd.f32 0.0, %v391
  %v393 = vpop.f32.mrb[0].mxu0
  %v394 = vadd.f32 0.0, %v393
  %395 = vdwg.mxu0
  %v396 = vadd.f32 %v250, %v321
  %v397 = vadd.f32 %v251, %v323
  %v398 = vadd.f32 %v252, %v392
  %v399 = vadd.f32 %v253, %v394
  %v400 = vtanh.pop %v396
  %v401 = vtanh.pop %v397
  %v402 = vtanh.pop %v398
  %v403 = vtanh.pop %v399
  %v404 = vmul.f32 %v400, 0.5
  %v405 = vmul.f32 %v401, 0.5
  %v406 = vmul.f32 %v402, 0.5
  %v407 = vadd.f32 %v404, 0.5
  %v408 = vadd.f32 %v405, 0.5
  %v409 = vadd.f32 %v406, 0.5
  %v410 = vmul.f32 %v408, %v245
  %v411 = vmul.f32 %v407, %v403
  %v412 = vadd.f32 %v410, %v411
  %v413 = vtanh.pop %v412
  %v414 = vmul.f32 %v409, %v413
  %s415 = scalar_lea.vmem %s2, 8
  %416 = vst [vmem:[%s415] sm:$0xff] %v414
  %s417 = scalar_lea.vmem %s0, 64
  %v418 = vld [vmem:[%s417] sm:$0xff]
  %v419 = vld [vmem:[%s417 + $0x8] sm:$0xff]
  %v420 = vld [vmem:[%s417 + $0x10] sm:$0xff]
  %v421 = vld [vmem:[%s417 + $0x18] sm:$0xff]
  %422 = vmatprep.subr.mxu0 %v18
  %423 = vmatpush1.msra.mxu0 %v17
  %424 = vmatprep.subr.mxu0 %v22
  %425 = vmatpush1.msra.mxu0 %v21
  %426 = vmatprep.subr.mxu0 %v26
  %427 = vmatpush1.msra.mxu0 %v25
  %428 = vmatprep.subr.mxu0 %v30
  %429 = vmatpush1.msra.mxu0 %v29
  %430 = vmatprep.subr.mxu0 %v34
  %431 = vmatpush1.msra.mxu0 %v33
  %432 = vmatprep.subr.mxu0 %v38
  %433 = vmatpush1.msra.mxu0 %v37
  %434 = vmatprep.subr.mxu0 %v42
  %435 = vmatpush1.msra.mxu0 %v41
  %436 = vmatprep.subr.mxu0 %v46
  %437 = vmatpush1.msra.mxu0 %v45
  %438 = vmatprep.subr.mxu0 %v50
  %439 = vmatpush1.msra.mxu0 %v49
  %440 = vmatprep.subr.mxu0 %v54
  %441 = vmatpush1.msra.mxu0 %v53
  %442 = vmatprep.subr.mxu0 %v58
  %443 = vmatpush1.msra.mxu0 %v57
  %444 = vmatprep.subr.mxu0 %v62
  %445 = vmatpush1.msra.mxu0 %v61
  %446 = vmatprep.subr.mxu0 %v66
  %447 = vmatpush1.msra.mxu0 %v65
  %448 = vmatprep.subr.mxu0 %v70
  %449 = vmatpush1.msra.mxu0 %v69
  %450 = vmatprep.subr.mxu0 %v74
  %451 = vmatpush1.msra.mxu0 %v73
  %452 = vmatprep.subr.mxu0 %v78
  %453 = vmatpush1.msra.mxu0 %v77
  %454 = vmatprep.subr.mxu0 0.0
  %455 = vmatpush1.msra.mxu0 0.0
  %456 = vmatprep.subr.mxu0 0.0
  %457 = vmatpush1.msra.mxu0 0.0
  %458 = vmatprep.subr.mxu0 0.0
  %459 = vmatpush1.msra.mxu0 0.0
  %460 = vmatprep.subr.mxu0 0.0
  %461 = vmatpush1.msra.mxu0 0.0
  %462 = vmatprep.subr.mxu0 0.0
  %463 = vmatpush1.msra.mxu0 0.0
  %464 = vmatprep.subr.mxu0 0.0
  %465 = vmatpush1.msra.mxu0 0.0
  %466 = vmatprep.subr.mxu0 0.0
  %467 = vmatpush1.msra.mxu0 0.0
  %468 = vmatprep.subr.mxu0 0.0
  %469 = vmatpush1.msra.mxu0 0.0
  %470 = vmatprep.subr.mxu0 0.0
  %471 = vmatpush1.msra.mxu0 0.0
  %472 = vmatprep.subr.mxu0 0.0
  %473 = vmatpush1.msra.mxu0 0.0
  %474 = vmatprep.subr.mxu0 0.0
  %475 = vmatpush1.msra.mxu0 0.0
  %476 = vmatprep.subr.mxu0 0.0
  %477 = vmatpush1.msra.mxu0 0.0
  %478 = vmatprep.subr.mxu0 0.0
  %479 = vmatpush1.msra.mxu0 0.0
  %480 = vmatprep.subr.mxu0 0.0
  %481 = vmatpush1.msra.mxu0 0.0
  %482 = vmatprep.subr.mxu0 0.0
  %483 = vmatpush1.msra.mxu0 0.0
  %484 = vmatprep.subr.mxu0 0.0
  %485 = vmatpush1.msra.mxu0 0.0
  %486 = vmatprep.mubr.f32.mxu0 0.0
  %487 = vmatmul.mubr.f32.gmra.mrb[0].mxu0 %v414
  %v488 = vpop.f32.mrb[0].mxu0
  %v489 = vadd.f32 0.0, %v488
  %v490 = vpop.f32.mrb[0].mxu0
  %v491 = vadd.f32 0.0, %v490
  %492 = vdwg.mxu0
  %493 = vmatprep.subr.mxu0 %v20
  %494 = vmatpush1.msra.mxu0 %v19
  %495 = vmatprep.subr.mxu0 %v24
  %496 = vmatpush1.msra.mxu0 %v23
  %497 = vmatprep.subr.mxu0 %v28
  %498 = vmatpush1.msra.mxu0 %v27
  %499 = vmatprep.subr.mxu0 %v32
  %500 = vmatpush1.msra.mxu0 %v31
  %501 = vmatprep.subr.mxu0 %v36
  %502 = vmatpush1.msra.mxu0 %v35
  %503 = vmatprep.subr.mxu0 %v40
  %504 = vmatpush1.msra.mxu0 %v39
  %505 = vmatprep.subr.mxu0 %v44
  %506 = vmatpush1.msra.mxu0 %v43
  %507 = vmatprep.subr.mxu0 %v48
  %508 = vmatpush1.msra.mxu0 %v47
  %509 = vmatprep.subr.mxu0 %v52
  %510 = vmatpush1.msra.mxu0 %v51
  %511 = vmatprep.subr.mxu0 %v56
  %512 = vmatpush1.msra.mxu0 %v55
  %513 = vmatprep.subr.mxu0 %v60
  %514 = vmatpush1.msra.mxu0 %v59
  %515 = vmatprep.subr.mxu0 %v64
  %516 = vmatpush1.msra.mxu0 %v63
  %517 = vmatprep.subr.mxu0 %v68
  %518 = vmatpush1.msra.mxu0 %v67
  %519 = vmatprep.subr.mxu0 %v72
  %520 = vmatpush1.msra.mxu0 %v71
  %521 = vmatprep.subr.mxu0 %v76
  %522 = vmatpush1.msra.mxu0 %v75
  %523 = vmatprep.subr.mxu0 %v80
  %524 = vmatpush1.msra.mxu0 %v79
  %525 = vmatprep.subr.mxu0 0.0
  %526 = vmatpush1.msra.mxu0 0.0
  %527 = vmatprep.subr.mxu0 0.0
  %528 = vmatpush1.msra.mxu0 0.0
  %529 = vmatprep.subr.mxu0 0.0
  %530 = vmatpush1.msra.mxu0 0.0
  %531 = vmatprep.subr.mxu0 0.0
  %532 = vmatpush1.msra.mxu0 0.0
  %533 = vmatprep.subr.mxu0 0.0
  %534 = vmatpush1.msra.mxu0 0.0
  %535 = vmatprep.subr.mxu0 0.0
  %536 = vmatpush1.msra.mxu0 0.0
  %537 = vmatprep.subr.mxu0 0.0
  %538 = vmatpush1.msra.mxu0 0.0
  %539 = vmatprep.subr.mxu0 0.0
  %540 = vmatpush1.msra.mxu0 0.0
  %541 = vmatprep.subr.mxu0 0.0
  %542 = vmatpush1.msra.mxu0 0.0
  %543 = vmatprep.subr.mxu0 0.0
  %544 = vmatpush1.msra.mxu0 0.0
  %545 = vmatprep.subr.mxu0 0.0
  %546 = vmatpush1.msra.mxu0 0.0
  %547 = vmatprep.subr.mxu0 0.0
  %548 = vmatpush1.msra.mxu0 0.0
  %549 = vmatprep.subr.mxu0 0.0
  %550 = vmatpush1.msra.mxu0 0.0
  %551 = vmatprep.subr.mxu0 0.0
  %552 = vmatpush1.msra.mxu0 0.0
  %553 = vmatprep.subr.mxu0 0.0
  %554 = vmatpush1.msra.mxu0 0.0
  %555 = vmatprep.subr.mxu0 0.0
  %556 = vmatpush1.msra.mxu0 0.0
  %557 = vmatprep.mubr.f32.mxu0 0.0
  %558 = vmatmul.mubr.f32.gmra.mrb[0].mxu0 %v414
  %v559 = vpop.f32.mrb[0].mxu0
  %v560 = vadd.f32 0.0, %v559
  %v561 = vpop.f32.mrb[0].mxu0
  %v562 = vadd.f32 0.0, %v561
  %563 = vdwg.mxu0
  %v564 = vadd.f32 %v418, %v489
  %v565 = vadd.f32 %v419, %v491
  %v566 = vadd.f32 %v420, %v560
  %v567 = vadd.f32 %v421, %v562
  %v568 = vtanh.pop %v564
  %v569 = vtanh.pop %v565
  %v570 = vtanh.pop %v566
  %v571 = vtanh.pop %v567
  %v572 = vmul.f32 %v568, 0.5
  %v573 = vmul.f32 %v569, 0.5
  %v574 = vmul.f32 %v570, 0.5
  %v575 = vadd.f32 %v572, 0.5
  %v576 = vadd.f32 %v573, 0.5
  %v577 = vadd.f32 %v574, 0.5
  %v578 = vmul.f32 %v576, %v412
  %v579 = vmul.f32 %v575, %v571
  %v580 = vadd.f32 %v578, %v579
  %v581 = vtanh.pop %v580
  %v582 = vmul.f32 %v577, %v581
  %s583 = scalar_lea.vmem %s2, 16
  %584 = vst [vmem:[%s583] sm:$0xff] %v582
  %s585 = scalar_lea.vmem %s0, 96
  %v586 = vld [vmem:[%s585] sm:$0xff]
  %v587 = vld [vmem:[%s585 + $0x8] sm:$0xff]
  %v588 = vld [vmem:[%s585 + $0x10] sm:$0xff]
  %v589 = vld [vmem:[%s585 + $0x18] sm:$0xff]
  %590 = vmatprep.subr.mxu0 %v18
  %591 = vmatpush1.msra.mxu0 %v17
  %592 = vmatprep.subr.mxu0 %v22
  %593 = vmatpush1.msra.mxu0 %v21
  %594 = vmatprep.subr.mxu0 %v26
  %595 = vmatpush1.msra.mxu0 %v25
  %596 = vmatprep.subr.mxu0 %v30
  %597 = vmatpush1.msra.mxu0 %v29
  %598 = vmatprep.subr.mxu0 %v34
  %599 = vmatpush1.msra.mxu0 %v33
  %600 = vmatprep.subr.mxu0 %v38
  %601 = vmatpush1.msra.mxu0 %v37
  %602 = vmatprep.subr.mxu0 %v42
  %603 = vmatpush1.msra.mxu0 %v41
  %604 = vmatprep.subr.mxu0 %v46
  %605 = vmatpush1.msra.mxu0 %v45
  %606 = vmatprep.subr.mxu0 %v50
  %607 = vmatpush1.msra.mxu0 %v49
  %608 = vmatprep.subr.mxu0 %v54
  %609 = vmatpush1.msra.mxu0 %v53
  %610 = vmatprep.subr.mxu0 %v58
  %611 = vmatpush1.msra.mxu0 %v57
  %612 = vmatprep.subr.mxu0 %v62
  %613 = vmatpush1.msra.mxu0 %v61
  %614 = vmatprep.subr.mxu0 %v66
  %615 = vmatpush1.msra.mxu0 %v65
  %616 = vmatprep.subr.mxu0 %v70
  %617 = vmatpush1.msra.mxu0 %v69
  %618 = vmatprep.subr.mxu0 %v74
  %619 = vmatpush1.msra.mxu0 %v73
  %620 = vmatprep.subr.mxu0 %v78
  %621 = vmatpush1.msra.mxu0 %v77
  %622 = vmatprep.subr.mxu0 0.0
  %623 = vmatpush1.msra.mxu0 0.0
  %624 = vmatprep.subr.mxu0 0.0
  %625 = vmatpush1.msra.mxu0 0.0
  %626 = vmatprep.subr.mxu0 0.0
  %627 = vmatpush1.msra.mxu0 0.0
  %628 = vmatprep.subr.mxu0 0.0
  %629 = vmatpush1.msra.mxu0 0.0
  %630 = vmatprep.subr.mxu0 0.0
  %631 = vmatpush1.msra.mxu0 0.0
  %632 = vmatprep.subr.mxu0 0.0
  %633 = vmatpush1.msra.mxu0 0.0
  %634 = vmatprep.subr.mxu0 0.0
  %635 = vmatpush1.msra.mxu0 0.0
  %636 = vmatprep.subr.mxu0 0.0
  %637 = vmatpush1.msra.mxu0 0.0
  %638 = vmatprep.subr.mxu0 0.0
  %639 = vmatpush1.msra.mxu0 0.0
  %640 = vmatprep.subr.mxu0 0.0
  %641 = vmatpush1.msra.mxu0 0.0
  %642 = vmatprep.subr.mxu0 0.0
  %643 = vmatpush1.msra.mxu0 0.0
  %644 = vmatprep.subr.mxu0 0.0
  %645 = vmatpush1.msra.mxu0 0.0
  %646 = vmatprep.subr.mxu0 0.0
  %647 = vmatpush1.msra.mxu0 0.0
  %648 = vmatprep.subr.mxu0 0.0
  %649 = vmatpush1.msra.mxu0 0.0
  %650 = vmatprep.subr.mxu0 0.0
  %651 = vmatpush1.msra.mxu0 0.0
  %652 = vmatprep.subr.mxu0 0.0
  %653 = vmatpush1.msra.mxu0 0.0
  %654 = vmatprep.mubr.f32.mxu0 0.0
  %655 = vmatmul.mubr.f32.gmra.mrb[0].mxu0 %v582
  %v656 = vpop.f32.mrb[0].mxu0
  %v657 = vadd.f32 0.0, %v656
  %v658 = vpop.f32.mrb[0].mxu0
  %v659 = vadd.f32 0.0, %v658
  %660 = vdwg.mxu0
  %661 = vmatprep.subr.mxu0 %v20
  %662 = vmatpush1.msra.mxu0 %v19
  %663 = vmatprep.subr.mxu0 %v24
  %664 = vmatpush1.msra.mxu0 %v23
  %665 = vmatprep.subr.mxu0 %v28
  %666 = vmatpush1.msra.mxu0 %v27
  %667 = vmatprep.subr.mxu0 %v32
  %668 = vmatpush1.msra.mxu0 %v31
  %669 = vmatprep.subr.mxu0 %v36
  %670 = vmatpush1.msra.mxu0 %v35
  %671 = vmatprep.subr.mxu0 %v40
  %672 = vmatpush1.msra.mxu0 %v39
  %673 = vmatprep.subr.mxu0 %v44
  %674 = vmatpush1.msra.mxu0 %v43
  %675 = vmatprep.subr.mxu0 %v48
  %676 = vmatpush1.msra.mxu0 %v47
  %677 = vmatprep.subr.mxu0 %v52
  %678 = vmatpush1.msra.mxu0 %v51
  %679 = vmatprep.subr.mxu0 %v56
  %680 = vmatpush1.msra.mxu0 %v55
  %681 = vmatprep.subr.mxu0 %v60
  %682 = vmatpush1.msra.mxu0 %v59
  %683 = vmatprep.subr.mxu0 %v64
  %684 = vmatpush1.msra.mxu0 %v63
  %685 = vmatprep.subr.mxu0 %v68
  %686 = vmatpush1.msra.mxu0 %v67
  %687 = vmatprep.subr.mxu0 %v72
  %688 = vmatpush1.msra.mxu0 %v71
  %689 = vmatprep.subr.mxu0 %v76
  %690 = vmatpush1.msra.mxu0 %v75
  %691 = vmatprep.subr.mxu0 %v80
  %692 = vmatpush1.msra.mxu0 %v79
  %693 = vmatprep.subr.mxu0 0.0
  %694 = vmatpush1.msra.mxu0 0.0
  %695 = vmatprep.subr.mxu0 0.0
  %696 = vmatpush1.msra.mxu0 0.0
  %697 = vmatprep.subr.mxu0 0.0
  %698 = vmatpush1.msra.mxu0 0.0
  %699 = vmatprep.subr.mxu0 0.0
  %700 = vmatpush1.msra.mxu0 0.0
  %701 = vmatprep.subr.mxu0 0.0
  %702 = vmatpush1.msra.mxu0 0.0
  %703 = vmatprep.subr.mxu0 0.0
  %704 = vmatpush1.msra.mxu0 0.0
  %705 = vmatprep.subr.mxu0 0.0
  %706 = vmatpush1.msra.mxu0 0.0
  %707 = vmatprep.subr.mxu0 0.0
  %708 = vmatpush1.msra.mxu0 0.0
  %709 = vmatprep.subr.mxu0 0.0
  %710 = vmatpush1.msra.mxu0 0.0
  %711 = vmatprep.subr.mxu0 0.0
  %712 = vmatpush1.msra.mxu0 0.0
  %713 = vmatprep.subr.mxu0 0.0
  %714 = vmatpush1.msra.mxu0 0.0
  %715 = vmatprep.subr.mxu0 0.0
  %716 = vmatpush1.msra.mxu0 0.0
  %717 = vmatprep.subr.mxu0 0.0
  %718 = vmatpush1.msra.mxu0 0.0
  %719 = vmatprep.subr.mxu0 0.0
  %720 = vmatpush1.msra.mxu0 0.0
  %721 = vmatprep.subr.mxu0 0.0
  %722 = vmatpush1.msra.mxu0 0.0
  %723 = vmatprep.subr.mxu0 0.0
  %724 = vmatpush1.msra.mxu0 0.0
  %725 = vmatprep.mubr.f32.mxu0 0.0
  %726 = vmatmul.mubr.f32.gmra.mrb[0].mxu0 %v582
  %v727 = vpop.f32.mrb[0].mxu0
  %v728 = vadd.f32 0.0, %v727
  %v729 = vpop.f32.mrb[0].mxu0
  %v730 = vadd.f32 0.0, %v729
  %731 = vdwg.mxu0
  %v732 = vadd.f32 %v586, %v657
  %v733 = vadd.f32 %v587, %v659
  %v734 = vadd.f32 %v588, %v728
  %v735 = vadd.f32 %v589, %v730
  %v736 = vtanh.pop %v732
  %v737 = vtanh.pop %v733
  %v738 = vtanh.pop %v734
  %v739 = vtanh.pop %v735
  %v740 = vmul.f32 %v736, 0.5
  %v741 = vmul.f32 %v737, 0.5
  %v742 = vmul.f32 %v738, 0.5
  %v743 = vadd.f32 %v740, 0.5
  %v744 = vadd.f32 %v741, 0.5
  %v745 = vadd.f32 %v742, 0.5
  %v746 = vmul.f32 %v744, %v580
  %v747 = vmul.f32 %v743, %v739
  %v748 = vadd.f32 %v746, %v747
  %v749 = vtanh.pop %v748
  %v750 = vmul.f32 %v745, %v749
  %s751 = scalar_lea.vmem %s2, 24
  %752 = vst [vmem:[%s751] sm:$0xff] %v750
  %s753 = scalar_lea.vmem %s0, 128
  %v754 = vld [vmem:[%s753] sm:$0xff]
  %v755 = vld [vmem:[%s753 + $0x8] sm:$0xff]
  %v756 = vld [vmem:[%s753 + $0x10] sm:$0xff]
  %v757 = vld [vmem:[%s753 + $0x18] sm:$0xff]
  %758 = vmatprep.subr.mxu0 %v18
  %759 = vmatpush1.msra.mxu0 %v17
  %760 = vmatprep.subr.mxu0 %v22
  %761 = vmatpush1.msra.mxu0 %v21
  %762 = vmatprep.subr.mxu0 %v26
  %763 = vmatpush1.msra.mxu0 %v25
  %764 = vmatprep.subr.mxu0 %v30
  %765 = vmatpush1.msra.mxu0 %v29
  %766 = vmatprep.subr.mxu0 %v34
  %767 = vmatpush1.msra.mxu0 %v33
  %768 = vmatprep.subr.mxu0 %v38
  %769 = vmatpush1.msra.mxu0 %v37
  %770 = vmatprep.subr.mxu0 %v42
  %771 = vmatpush1.msra.mxu0 %v41
  %772 = vmatprep.subr.mxu0 %v46
  %773 = vmatpush1.msra.mxu0 %v45
  %774 = vmatprep.subr.mxu0 %v50
  %775 = vmatpush1.msra.mxu0 %v49
  %776 = vmatprep.subr.mxu0 %v54
  %777 = vmatpush1.msra.mxu0 %v53
  %778 = vmatprep.subr.mxu0 %v58
  %779 = vmatpush1.msra.mxu0 %v57
  %780 = vmatprep.subr.mxu0 %v62
  %781 = vmatpush1.msra.mxu0 %v61
  %782 = vmatprep.subr.mxu0 %v66
  %783 = vmatpush1.msra.mxu0 %v65
  %784 = vmatprep.subr.mxu0 %v70
  %785 = vmatpush1.msra.mxu0 %v69
  %786 = vmatprep.subr.mxu0 %v74
  %787 = vmatpush1.msra.mxu0 %v73
  %788 = vmatprep.subr.mxu0 %v78
  %789 = vmatpush1.msra.mxu0 %v77
  %790 = vmatprep.subr.mxu0 0.0
  %791 = vmatpush1.msra.mxu0 0.0
  %792 = vmatprep.subr.mxu0 0.0
  %793 = vmatpush1.msra.mxu0 0.0
  %794 = vmatprep.subr.mxu0 0.0
  %795 = vmatpush1.msra.mxu0 0.0
  %796 = vmatprep.subr.mxu0 0.0
  %797 = vmatpush1.msra.mxu0 0.0
  %798 = vmatprep.subr.mxu0 0.0
  %799 = vmatpush1.msra.mxu0 0.0
  %800 = vmatprep.subr.mxu0 0.0
  %801 = vmatpush1.msra.mxu0 0.0
  %802 = vmatprep.subr.mxu0 0.0
  %803 = vmatpush1.msra.mxu0 0.0
  %804 = vmatprep.subr.mxu0 0.0
  %805 = vmatpush1.msra.mxu0 0.0
  %806 = vmatprep.subr.mxu0 0.0
  %807 = vmatpush1.msra.mxu0 0.0
  %808 = vmatprep.subr.mxu0 0.0
  %809 = vmatpush1.msra.mxu0 0.0
  %810 = vmatprep.subr.mxu0 0.0
  %811 = vmatpush1.msra.mxu0 0.0
  %812 = vmatprep.subr.mxu0 0.0
  %813 = vmatpush1.msra.mxu0 0.0
  %814 = vmatprep.subr.mxu0 0.0
  %815 = vmatpush1.msra.mxu0 0.0
  %816 = vmatprep.subr.mxu0 0.0
  %817 = vmatpush1.msra.mxu0 0.0
  %818 = vmatprep.subr.mxu0 0.0
  %819 = vmatpush1.msra.mxu0 0.0
  %820 = vmatprep.subr.mxu0 0.0
  %821 = vmatpush1.msra.mxu0 0.0
  %822 = vmatprep.mubr.f32.mxu0 0.0
  %823 = vmatmul.mubr.f32.gmra.mrb[0].mxu0 %v750
  %v824 = vpop.f32.mrb[0].mxu0
  %v825 = vadd.f32 0.0, %v824
  %v826 = vpop.f32.mrb[0].mxu0
  %v827 = vadd.f32 0.0, %v826
  %828 = vdwg.mxu0
  %829 = vmatprep.subr.mxu0 %v20
  %830 = vmatpush1.msra.mxu0 %v19
  %831 = vmatprep.subr.mxu0 %v24
  %832 = vmatpush1.msra.mxu0 %v23
  %833 = vmatprep.subr.mxu0 %v28
  %834 = vmatpush1.msra.mxu0 %v27
  %835 = vmatprep.subr.mxu0 %v32
  %836 = vmatpush1.msra.mxu0 %v31
  %837 = vmatprep.subr.mxu0 %v36
  %838 = vmatpush1.msra.mxu0 %v35
  %839 = vmatprep.subr.mxu0 %v40
  %840 = vmatpush1.msra.mxu0 %v39
  %841 = vmatprep.subr.mxu0 %v44
  %842 = vmatpush1.msra.mxu0 %v43
  %843 = vmatprep.subr.mxu0 %v48
  %844 = vmatpush1.msra.mxu0 %v47
  %845 = vmatprep.subr.mxu0 %v52
  %846 = vmatpush1.msra.mxu0 %v51
  %847 = vmatprep.subr.mxu0 %v56
  %848 = vmatpush1.msra.mxu0 %v55
  %849 = vmatprep.subr.mxu0 %v60
  %850 = vmatpush1.msra.mxu0 %v59
  %851 = vmatprep.subr.mxu0 %v64
  %852 = vmatpush1.msra.mxu0 %v63
  %853 = vmatprep.subr.mxu0 %v68
  %854 = vmatpush1.msra.mxu0 %v67
  %855 = vmatprep.subr.mxu0 %v72
  %856 = vmatpush1.msra.mxu0 %v71
  %857 = vmatprep.subr.mxu0 %v76
  %858 = vmatpush1.msra.mxu0 %v75
  %859 = vmatprep.subr.mxu0 %v80
  %860 = vmatpush1.msra.mxu0 %v79
  %861 = vmatprep.subr.mxu0 0.0
  %862 = vmatpush1.msra.mxu0 0.0
  %863 = vmatprep.subr.mxu0 0.0
  %864 = vmatpush1.msra.mxu0 0.0
  %865 = vmatprep.subr.mxu0 0.0
  %866 = vmatpush1.msra.mxu0 0.0
  %867 = vmatprep.subr.mxu0 0.0
  %868 = vmatpush1.msra.mxu0 0.0
  %869 = vmatprep.subr.mxu0 0.0
  %870 = vmatpush1.msra.mxu0 0.0
  %871 = vmatprep.subr.mxu0 0.0
  %872 = vmatpush1.msra.mxu0 0.0
  %873 = vmatprep.subr.mxu0 0.0
  %874 = vmatpush1.msra.mxu0 0.0
  %875 = vmatprep.subr.mxu0 0.0
  %876 = vmatpush1.msra.mxu0 0.0
  %877 = vmatprep.subr.mxu0 0.0
  %878 = vmatpush1.msra.mxu0 0.0
  %879 = vmatprep.subr.mxu0 0.0
  %880 = vmatpush1.msra.mxu0 0.0
  %881 = vmatprep.subr.mxu0 0.0
  %882 = vmatpush1.msra.mxu0 0.0
  %883 = vmatprep.subr.mxu0 0.0
  %884 = vmatpush1.msra.mxu0 0.0
  %885 = vmatprep.subr.mxu0 0.0
  %886 = vmatpush1.msra.mxu0 0.0
  %887 = vmatprep.subr.mxu0 0.0
  %888 = vmatpush1.msra.mxu0 0.0
  %889 = vmatprep.subr.mxu0 0.0
  %890 = vmatpush1.msra.mxu0 0.0
  %891 = vmatprep.subr.mxu0 0.0
  %892 = vmatpush1.msra.mxu0 0.0
  %893 = vmatprep.mubr.f32.mxu0 0.0
  %894 = vmatmul.mubr.f32.gmra.mrb[0].mxu0 %v750
  %v895 = vpop.f32.mrb[0].mxu0
  %v896 = vadd.f32 0.0, %v895
  %v897 = vpop.f32.mrb[0].mxu0
  %v898 = vadd.f32 0.0, %v897
  %899 = vdwg.mxu0
  %v900 = vadd.f32 %v754, %v825
  %v901 = vadd.f32 %v755, %v827
  %v902 = vadd.f32 %v756, %v896
  %v903 = vadd.f32 %v757, %v898
  %v904 = vtanh.pop %v900
  %v905 = vtanh.pop %v901
  %v906 = vtanh.pop %v902
  %v907 = vtanh.pop %v903
  %v908 = vmul.f32 %v904, 0.5
  %v909 = vmul.f32 %v905, 0.5
  %v910 = vmul.f32 %v906, 0.5
  %v911 = vadd.f32 %v908, 0.5
  %v912 = vadd.f32 %v909, 0.5
  %v913 = vadd.f32 %v910, 0.5
  %v914 = vmul.f32 %v912, %v748
  %v915 = vmul.f32 %v911, %v907
  %v916 = vadd.f32 %v914, %v915
  %v917 = vtanh.pop %v916
  %v918 = vmul.f32 %v913, %v917
  %s919 = scalar_lea.vmem %s2, 32
  %920 = vst [vmem:[%s919] sm:$0xff] %v918
  %s921 = scalar_lea.vmem %s0, 160
  %v922 = vld [vmem:[%s921] sm:$0xff]
  %v923 = vld [vmem:[%s921 + $0x8] sm:$0xff]
  %v924 = vld [vmem:[%s921 + $0x10] sm:$0xff]
  %v925 = vld [vmem:[%s921 + $0x18] sm:$0xff]
  %926 = vmatprep.subr.mxu0 %v18
  %927 = vmatpush1.msra.mxu0 %v17
  %928 = vmatprep.subr.mxu0 %v22
  %929 = vmatpush1.msra.mxu0 %v21
  %930 = vmatprep.subr.mxu0 %v26
  %931 = vmatpush1.msra.mxu0 %v25
  %932 = vmatprep.subr.mxu0 %v30
  %933 = vmatpush1.msra.mxu0 %v29
  %934 = vmatprep.subr.mxu0 %v34
  %935 = vmatpush1.msra.mxu0 %v33
  %936 = vmatprep.subr.mxu0 %v38
  %937 = vmatpush1.msra.mxu0 %v37
  %938 = vmatprep.subr.mxu0 %v42
  %939 = vmatpush1.msra.mxu0 %v41
  %940 = vmatprep.subr.mxu0 %v46
  %941 = vmatpush1.msra.mxu0 %v45
  %942 = vmatprep.subr.mxu0 %v50
  %943 = vmatpush1.msra.mxu0 %v49
  %944 = vmatprep.subr.mxu0 %v54
  %945 = vmatpush1.msra.mxu0 %v53
  %946 = vmatprep.subr.mxu0 %v58
  %947 = vmatpush1.msra.mxu0 %v57
  %948 = vmatprep.subr.mxu0 %v62
  %949 = vmatpush1.msra.mxu0 %v61
  %950 = vmatprep.subr.mxu0 %v66
  %951 = vmatpush1.msra.mxu0 %v65
  %952 = vmatprep.subr.mxu0 %v70
  %953 = vmatpush1.msra.mxu0 %v69
  %954 = vmatprep.subr.mxu0 %v74
  %955 = vmatpush1.msra.mxu0 %v73
  %956 = vmatprep.subr.mxu0 %v78
  %957 = vmatpush1.msra.mxu0 %v77
  %958 = vmatprep.subr.mxu0 0.0
  %959 = vmatpush1.msra.mxu0 0.0
  %960 = vmatprep.subr.mxu0 0.0
  %961 = vmatpush1.msra.mxu0 0.0
  %962 = vmatprep.subr.mxu0 0.0
  %963 = vmatpush1.msra.mxu0 0.0
  %964 = vmatprep.subr.mxu0 0.0
  %965 = vmatpush1.msra.mxu0 0.0
  %966 = vmatprep.subr.mxu0 0.0
  %967 = vmatpush1.msra.mxu0 0.0
  %968 = vmatprep.subr.mxu0 0.0
  %969 = vmatpush1.msra.mxu0 0.0
  %970 = vmatprep.subr.mxu0 0.0
  %971 = vmatpush1.msra.mxu0 0.0
  %972 = vmatprep.subr.mxu0 0.0
  %973 = vmatpush1.msra.mxu0 0.0
  %974 = vmatprep.subr.mxu0 0.0
  %975 = vmatpush1.msra.mxu0 0.0
  %976 = vmatprep.subr.mxu0 0.0
  %977 = vmatpush1.msra.mxu0 0.0
  %978 = vmatprep.subr.mxu0 0.0
  %979 = vmatpush1.msra.mxu0 0.0
  %980 = vmatprep.subr.mxu0 0.0
  %981 = vmatpush1.msra.mxu0 0.0
  %982 = vmatprep.subr.mxu0 0.0
  %983 = vmatpush1.msra.mxu0 0.0
  %984 = vmatprep.subr.mxu0 0.0
  %985 = vmatpush1.msra.mxu0 0.0
  %986 = vmatprep.subr.mxu0 0.0
  %987 = vmatpush1.msra.mxu0 0.0
  %988 = vmatprep.subr.mxu0 0.0
  %989 = vmatpush1.msra.mxu0 0.0
  %990 = vmatprep.mubr.f32.mxu0 0.0
  %991 = vmatmul.mubr.f32.gmra.mrb[0].mxu0 %v918
  %v992 = vpop.f32.mrb[0].mxu0
  %v993 = vadd.f32 0.0, %v992
  %v994 = vpop.f32.mrb[0].mxu0
  %v995 = vadd.f32 0.0, %v994
  %996 = vdwg.mxu0
  %997 = vmatprep.subr.mxu0 %v20
  %998 = vmatpush1.msra.mxu0 %v19
  %999 = vmatprep.subr.mxu0 %v24
  %1000 = vmatpush1.msra.mxu0 %v23
  %1001 = vmatprep.subr.mxu0 %v28
  %1002 = vmatpush1.msra.mxu0 %v27
  %1003 = vmatprep.subr.mxu0 %v32
  %1004 = vmatpush1.msra.mxu0 %v31
  %1005 = vmatprep.subr.mxu0 %v36
  %1006 = vmatpush1.msra.mxu0 %v35
  %1007 = vmatprep.subr.mxu0 %v40
  %1008 = vmatpush1.msra.mxu0 %v39
  %1009 = vmatprep.subr.mxu0 %v44
  %1010 = vmatpush1.msra.mxu0 %v43
  %1011 = vmatprep.subr.mxu0 %v48
  %1012 = vmatpush1.msra.mxu0 %v47
  %1013 = vmatprep.subr.mxu0 %v52
  %1014 = vmatpush1.msra.mxu0 %v51
  %1015 = vmatprep.subr.mxu0 %v56
  %1016 = vmatpush1.msra.mxu0 %v55
  %1017 = vmatprep.subr.mxu0 %v60
  %1018 = vmatpush1.msra.mxu0 %v59
  %1019 = vmatprep.subr.mxu0 %v64
  %1020 = vmatpush1.msra.mxu0 %v63
  %1021 = vmatprep.subr.mxu0 %v68
  %1022 = vmatpush1.msra.mxu0 %v67
  %1023 = vmatprep.subr.mxu0 %v72
  %1024 = vmatpush1.msra.mxu0 %v71
  %1025 = vmatprep.subr.mxu0 %v76
  %1026 = vmatpush1.msra.mxu0 %v75
  %1027 = vmatprep.subr.mxu0 %v80
  %1028 = vmatpush1.msra.mxu0 %v79
  %1029 = vmatprep.subr.mxu0 0.0
  %1030 = vmatpush1.msra.mxu0 0.0
  %1031 = vmatprep.subr.mxu0 0.0
  %1032 = vmatpush1.msra.mxu0 0.0
  %1033 = vmatprep.subr.mxu0 0.0
  %1034 = vmatpush1.msra.mxu0 0.0
  %1035 = vmatprep.subr.mxu0 0.0
  %1036 = vmatpush1.msra.mxu0 0.0
  %1037 = vmatprep.subr.mxu0 0.0
  %1038 = vmatpush1.msra.mxu0 0.0
  %1039 = vmatprep.subr.mxu0 0.0
  %1040 = vmatpush1.msra.mxu0 0.0
  %1041 = vmatprep.subr.mxu0 0.0
  %1042 = vmatpush1.msra.mxu0 0.0
  %1043 = vmatprep.subr.mxu0 0.0
  %1044 = vmatpush1.msra.mxu0 0.0
  %1045 = vmatprep.subr.mxu0 0.0
  %1046 = vmatpush1.msra.mxu0 0.0
  %1047 = vmatprep.subr.mxu0 0.0
  %1048 = vmatpush1.msra.mxu0 0.0
  %1049 = vmatprep.subr.mxu0 0.0
  %1050 = vmatpush1.msra.mxu0 0.0
  %1051 = vmatprep.subr.mxu0 0.0
  %1052 = vmatpush1.msra.mxu0 0.0
  %1053 = vmatprep.subr.mxu0 0.0
  %1054 = vmatpush1.msra.mxu0 0.0
  %1055 = vmatprep.subr.mxu0 0.0
  %1056 = vmatpush1.msra.mxu0 0.0
  %1057 = vmatprep.subr.mxu0 0.0
  %1058 = vmatpush1.msra.mxu0 0.0
  %1059 = vmatprep.subr.mxu0 0.0
  %1060 = vmatpush1.msra.mxu0 0.0
  %1061 = vmatprep.mubr.f32.mxu0 0.0
  %1062 = vmatmul.mubr.f32.gmra.mrb[0].mxu0 %v918
  %v1063 = vpop.f32.mrb[0].mxu0
  %v1064 = vadd.f32 0.0, %v1063
  %v1065 = vpop.f32.mrb[0].mxu0
  %v1066 = vadd.f32 0.0, %v1065
  %1067 = vdwg.mxu0
  %v1068 = vadd.f32 %v922, %v993
  %v1069 = vadd.f32 %v923, %v995
  %v1070 = vadd.f32 %v924, %v1064
  %v1071 = vadd.f32 %v925, %v1066
  %v1072 = vtanh.pop %v1068
  %v1073 = vtanh.pop %v1069
  %v1074 = vtanh.pop %v1070
  %v1075 = vtanh.pop %v1071
  %v1076 = vmul.f32 %v1072, 0.5
  %v1077 = vmul.f32 %v1073, 0.5
  %v1078 = vmul.f32 %v1074, 0.5
  %v1079 = vadd.f32 %v1076, 0.5
  %v1080 = vadd.f32 %v1077, 0.5
  %v1081 = vadd.f32 %v1078, 0.5
  %v1082 = vmul.f32 %v1080, %v916
  %v1083 = vmul.f32 %v1079, %v1075
  %v1084 = vadd.f32 %v1082, %v1083
  %v1085 = vtanh.pop %v1084
  %v1086 = vmul.f32 %v1081, %v1085
  %s1087 = scalar_lea.vmem %s2, 40
  %1088 = vst [vmem:[%s1087] sm:$0xff] %v1086
  %s1089 = scalar_lea.vmem %s0, 192
  %v1090 = vld [vmem:[%s1089] sm:$0xff]
  %v1091 = vld [vmem:[%s1089 + $0x8] sm:$0xff]
  %v1092 = vld [vmem:[%s1089 + $0x10] sm:$0xff]
  %v1093 = vld [vmem:[%s1089 + $0x18] sm:$0xff]
  %1094 = vmatprep.subr.mxu0 %v18
  %1095 = vmatpush1.msra.mxu0 %v17
  %1096 = vmatprep.subr.mxu0 %v22
  %1097 = vmatpush1.msra.mxu0 %v21
  %1098 = vmatprep.subr.mxu0 %v26
  %1099 = vmatpush1.msra.mxu0 %v25
  %1100 = vmatprep.subr.mxu0 %v30
  %1101 = vmatpush1.msra.mxu0 %v29
  %1102 = vmatprep.subr.mxu0 %v34
  %1103 = vmatpush1.msra.mxu0 %v33
  %1104 = vmatprep.subr.mxu0 %v38
  %1105 = vmatpush1.msra.mxu0 %v37
  %1106 = vmatprep.subr.mxu0 %v42
  %1107 = vmatpush1.msra.mxu0 %v41
  %1108 = vmatprep.subr.mxu0 %v46
  %1109 = vmatpush1.msra.mxu0 %v45
  %1110 = vmatprep.subr.mxu0 %v50
  %1111 = vmatpush1.msra.mxu0 %v49
  %1112 = vmatprep.subr.mxu0 %v54
  %1113 = vmatpush1.msra.mxu0 %v53
  %1114 = vmatprep.subr.mxu0 %v58
  %1115 = vmatpush1.msra.mxu0 %v57
  %1116 = vmatprep.subr.mxu0 %v62
  %1117 = vmatpush1.msra.mxu0 %v61
  %1118 = vmatprep.subr.mxu0 %v66
  %1119 = vmatpush1.msra.mxu0 %v65
  %1120 = vmatprep.subr.mxu0 %v70
  %1121 = vmatpush1.msra.mxu0 %v69
  %1122 = vmatprep.subr.mxu0 %v74
  %1123 = vmatpush1.msra.mxu0 %v73
  %1124 = vmatprep.subr.mxu0 %v78
  %1125 = vmatpush1.msra.mxu0 %v77
  %1126 = vmatprep.subr.mxu0 0.0
  %1127 = vmatpush1.msra.mxu0 0.0
  %1128 = vmatprep.subr.mxu0 0.0
  %1129 = vmatpush1.msra.mxu0 0.0
  %1130 = vmatprep.subr.mxu0 0.0
  %1131 = vmatpush1.msra.mxu0 0.0
  %1132 = vmatprep.subr.mxu0 0.0
  %1133 = vmatpush1.msra.mxu0 0.0
  %1134 = vmatprep.subr.mxu0 0.0
  %1135 = vmatpush1.msra.mxu0 0.0
  %1136 = vmatprep.subr.mxu0 0.0
  %1137 = vmatpush1.msra.mxu0 0.0
  %1138 = vmatprep.subr.mxu0 0.0
  %1139 = vmatpush1.msra.mxu0 0.0
  %1140 = vmatprep.subr.mxu0 0.0
  %1141 = vmatpush1.msra.mxu0 0.0
  %1142 = vmatprep.subr.mxu0 0.0
  %1143 = vmatpush1.msra.mxu0 0.0
  %1144 = vmatprep.subr.mxu0 0.0
  %1145 = vmatpush1.msra.mxu0 0.0
  %1146 = vmatprep.subr.mxu0 0.0
  %1147 = vmatpush1.msra.mxu0 0.0
  %1148 = vmatprep.subr.mxu0 0.0
  %1149 = vmatpush1.msra.mxu0 0.0
  %1150 = vmatprep.subr.mxu0 0.0
  %1151 = vmatpush1.msra.mxu0 0.0
  %1152 = vmatprep.subr.mxu0 0.0
  %1153 = vmatpush1.msra.mxu0 0.0
  %1154 = vmatprep.subr.mxu0 0.0
  %1155 = vmatpush1.msra.mxu0 0.0
  %1156 = vmatprep.subr.mxu0 0.0
  %1157 = vmatpush1.msra.mxu0 0.0
  %1158 = vmatprep.mubr.f32.mxu0 0.0
  %1159 = vmatmul.mubr.f32.gmra.mrb[0].mxu0 %v1086
  %v1160 = vpop.f32.mrb[0].mxu0
  %v1161 = vadd.f32 0.0, %v1160
  %v1162 = vpop.f32.mrb[0].mxu0
  %v1163 = vadd.f32 0.0, %v1162
  %1164 = vdwg.mxu0
  %1165 = vmatprep.subr.mxu0 %v20
  %1166 = vmatpush1.msra.mxu0 %v19
  %1167 = vmatprep.subr.mxu0 %v24
  %1168 = vmatpush1.msra.mxu0 %v23
  %1169 = vmatprep.subr.mxu0 %v28
  %1170 = vmatpush1.msra.mxu0 %v27
  %1171 = vmatprep.subr.mxu0 %v32
  %1172 = vmatpush1.msra.mxu0 %v31
  %1173 = vmatprep.subr.mxu0 %v36
  %1174 = vmatpush1.msra.mxu0 %v35
  %1175 = vmatprep.subr.mxu0 %v40
  %1176 = vmatpush1.msra.mxu0 %v39
  %1177 = vmatprep.subr.mxu0 %v44
  %1178 = vmatpush1.msra.mxu0 %v43
  %1179 = vmatprep.subr.mxu0 %v48
  %1180 = vmatpush1.msra.mxu0 %v47
  %1181 = vmatprep.subr.mxu0 %v52
  %1182 = vmatpush1.msra.mxu0 %v51
  %1183 = vmatprep.subr.mxu0 %v56
  %1184 = vmatpush1.msra.mxu0 %v55
  %1185 = vmatprep.subr.mxu0 %v60
  %1186 = vmatpush1.msra.mxu0 %v59
  %1187 = vmatprep.subr.mxu0 %v64
  %1188 = vmatpush1.msra.mxu0 %v63
  %1189 = vmatprep.subr.mxu0 %v68
  %1190 = vmatpush1.msra.mxu0 %v67
  %1191 = vmatprep.subr.mxu0 %v72
  %1192 = vmatpush1.msra.mxu0 %v71
  %1193 = vmatprep.subr.mxu0 %v76
  %1194 = vmatpush1.msra.mxu0 %v75
  %1195 = vmatprep.subr.mxu0 %v80
  %1196 = vmatpush1.msra.mxu0 %v79
  %1197 = vmatprep.subr.mxu0 0.0
  %1198 = vmatpush1.msra.mxu0 0.0
  %1199 = vmatprep.subr.mxu0 0.0
  %1200 = vmatpush1.msra.mxu0 0.0
  %1201 = vmatprep.subr.mxu0 0.0
  %1202 = vmatpush1.msra.mxu0 0.0
  %1203 = vmatprep.subr.mxu0 0.0
  %1204 = vmatpush1.msra.mxu0 0.0
  %1205 = vmatprep.subr.mxu0 0.0
  %1206 = vmatpush1.msra.mxu0 0.0
  %1207 = vmatprep.subr.mxu0 0.0
  %1208 = vmatpush1.msra.mxu0 0.0
  %1209 = vmatprep.subr.mxu0 0.0
  %1210 = vmatpush1.msra.mxu0 0.0
  %1211 = vmatprep.subr.mxu0 0.0
  %1212 = vmatpush1.msra.mxu0 0.0
  %1213 = vmatprep.subr.mxu0 0.0
  %1214 = vmatpush1.msra.mxu0 0.0
  %1215 = vmatprep.subr.mxu0 0.0
  %1216 = vmatpush1.msra.mxu0 0.0
  %1217 = vmatprep.subr.mxu0 0.0
  %1218 = vmatpush1.msra.mxu0 0.0
  %1219 = vmatprep.subr.mxu0 0.0
  %1220 = vmatpush1.msra.mxu0 0.0
  %1221 = vmatprep.subr.mxu0 0.0
  %1222 = vmatpush1.msra.mxu0 0.0
  %1223 = vmatprep.subr.mxu0 0.0
  %1224 = vmatpush1.msra.mxu0 0.0
  %1225 = vmatprep.subr.mxu0 0.0
  %1226 = vmatpush1.msra.mxu0 0.0
  %1227 = vmatprep.subr.mxu0 0.0
  %1228 = vmatpush1.msra.mxu0 0.0
  %1229 = vmatprep.mubr.f32.mxu0 0.0
  %1230 = vmatmul.mubr.f32.gmra.mrb[0].mxu0 %v1086
  %v1231 = vpop.f32.mrb[0].mxu0
  %v1232 = vadd.f32 0.0, %v1231
  %v1233 = vpop.f32.mrb[0].mxu0
  %v1234 = vadd.f32 0.0, %v1233
  %1235 = vdwg.mxu0
  %v1236 = vadd.f32 %v1090, %v1161
  %v1237 = vadd.f32 %v1091, %v1163
  %v1238 = vadd.f32 %v1092, %v1232
  %v1239 = vadd.f32 %v1093, %v1234
  %v1240 = vtanh.pop %v1236
  %v1241 = vtanh.pop %v1237
  %v1242 = vtanh.pop %v1238
  %v1243 = vtanh.pop %v1239
  %v1244 = vmul.f32 %v1240, 0.5
  %v1245 = vmul.f32 %v1241, 0.5
  %v1246 = vmul.f32 %v1242, 0.5
  %v1247 = vadd.f32 %v1244, 0.5
  %v1248 = vadd.f32 %v1245, 0.5
  %v1249 = vadd.f32 %v1246, 0.5
  %v1250 = vmul.f32 %v1248, %v1084
  %v1251 = vmul.f32 %v1247, %v1243
  %v1252 = vadd.f32 %v1250, %v1251
  %v1253 = vtanh.pop %v1252
  %v1254 = vmul.f32 %v1249, %v1253
  %s1255 = scalar_lea.vmem %s2, 48
  %1256 = vst [vmem:[%s1255] sm:$0xff] %v1254
  %s1257 = scalar_lea.vmem %s0, 224
  %v1258 = vld [vmem:[%s1257] sm:$0xff]
  %v1259 = vld [vmem:[%s1257 + $0x8] sm:$0xff]
  %v1260 = vld [vmem:[%s1257 + $0x10] sm:$0xff]
  %v1261 = vld [vmem:[%s1257 + $0x18] sm:$0xff]
  %1262 = vmatprep.subr.mxu0 %v18
  %1263 = vmatpush1.msra.mxu0 %v17
  %1264 = vmatprep.subr.mxu0 %v22
  %1265 = vmatpush1.msra.mxu0 %v21
  %1266 = vmatprep.subr.mxu0 %v26
  %1267 = vmatpush1.msra.mxu0 %v25
  %1268 = vmatprep.subr.mxu0 %v30
  %1269 = vmatpush1.msra.mxu0 %v29
  %1270 = vmatprep.subr.mxu0 %v34
  %1271 = vmatpush1.msra.mxu0 %v33
  %1272 = vmatprep.subr.mxu0 %v38
  %1273 = vmatpush1.msra.mxu0 %v37
  %1274 = vmatprep.subr.mxu0 %v42
  %1275 = vmatpush1.msra.mxu0 %v41
  %1276 = vmatprep.subr.mxu0 %v46
  %1277 = vmatpush1.msra.mxu0 %v45
  %1278 = vmatprep.subr.mxu0 %v50
  %1279 = vmatpush1.msra.mxu0 %v49
  %1280 = vmatprep.subr.mxu0 %v54
  %1281 = vmatpush1.msra.mxu0 %v53
  %1282 = vmatprep.subr.mxu0 %v58
  %1283 = vmatpush1.msra.mxu0 %v57
  %1284 = vmatprep.subr.mxu0 %v62
  %1285 = vmatpush1.msra.mxu0 %v61
  %1286 = vmatprep.subr.mxu0 %v66
  %1287 = vmatpush1.msra.mxu0 %v65
  %1288 = vmatprep.subr.mxu0 %v70
  %1289 = vmatpush1.msra.mxu0 %v69
  %1290 = vmatprep.subr.mxu0 %v74
  %1291 = vmatpush1.msra.mxu0 %v73
  %1292 = vmatprep.subr.mxu0 %v78
  %1293 = vmatpush1.msra.mxu0 %v77
  %1294 = vmatprep.subr.mxu0 0.0
  %1295 = vmatpush1.msra.mxu0 0.0
  %1296 = vmatprep.subr.mxu0 0.0
  %1297 = vmatpush1.msra.mxu0 0.0
  %1298 = vmatprep.subr.mxu0 0.0
  %1299 = vmatpush1.msra.mxu0 0.0
  %1300 = vmatprep.subr.mxu0 0.0
  %1301 = vmatpush1.msra.mxu0 0.0
  %1302 = vmatprep.subr.mxu0 0.0
  %1303 = vmatpush1.msra.mxu0 0.0
  %1304 = vmatprep.subr.mxu0 0.0
  %1305 = vmatpush1.msra.mxu0 0.0
  %1306 = vmatprep.subr.mxu0 0.0
  %1307 = vmatpush1.msra.mxu0 0.0
  %1308 = vmatprep.subr.mxu0 0.0
  %1309 = vmatpush1.msra.mxu0 0.0
  %1310 = vmatprep.subr.mxu0 0.0
  %1311 = vmatpush1.msra.mxu0 0.0
  %1312 = vmatprep.subr.mxu0 0.0
  %1313 = vmatpush1.msra.mxu0 0.0
  %1314 = vmatprep.subr.mxu0 0.0
  %1315 = vmatpush1.msra.mxu0 0.0
  %1316 = vmatprep.subr.mxu0 0.0
  %1317 = vmatpush1.msra.mxu0 0.0
  %1318 = vmatprep.subr.mxu0 0.0
  %1319 = vmatpush1.msra.mxu0 0.0
  %1320 = vmatprep.subr.mxu0 0.0
  %1321 = vmatpush1.msra.mxu0 0.0
  %1322 = vmatprep.subr.mxu0 0.0
  %1323 = vmatpush1.msra.mxu0 0.0
  %1324 = vmatprep.subr.mxu0 0.0
  %1325 = vmatpush1.msra.mxu0 0.0
  %1326 = vmatprep.mubr.f32.mxu0 0.0
  %1327 = vmatmul.mubr.f32.gmra.mrb[0].mxu0 %v1254
  %v1328 = vpop.f32.mrb[0].mxu0
  %v1329 = vadd.f32 0.0, %v1328
  %v1330 = vpop.f32.mrb[0].mxu0
  %v1331 = vadd.f32 0.0, %v1330
  %1332 = vdwg.mxu0
  %1333 = vmatprep.subr.mxu0 %v20
  %1334 = vmatpush1.msra.mxu0 %v19
  %1335 = vmatprep.subr.mxu0 %v24
  %1336 = vmatpush1.msra.mxu0 %v23
  %1337 = vmatprep.subr.mxu0 %v28
  %1338 = vmatpush1.msra.mxu0 %v27
  %1339 = vmatprep.subr.mxu0 %v32
  %1340 = vmatpush1.msra.mxu0 %v31
  %1341 = vmatprep.subr.mxu0 %v36
  %1342 = vmatpush1.msra.mxu0 %v35
  %1343 = vmatprep.subr.mxu0 %v40
  %1344 = vmatpush1.msra.mxu0 %v39
  %1345 = vmatprep.subr.mxu0 %v44
  %1346 = vmatpush1.msra.mxu0 %v43
  %1347 = vmatprep.subr.mxu0 %v48
  %1348 = vmatpush1.msra.mxu0 %v47
  %1349 = vmatprep.subr.mxu0 %v52
  %1350 = vmatpush1.msra.mxu0 %v51
  %1351 = vmatprep.subr.mxu0 %v56
  %1352 = vmatpush1.msra.mxu0 %v55
  %1353 = vmatprep.subr.mxu0 %v60
  %1354 = vmatpush1.msra.mxu0 %v59
  %1355 = vmatprep.subr.mxu0 %v64
  %1356 = vmatpush1.msra.mxu0 %v63
  %1357 = vmatprep.subr.mxu0 %v68
  %1358 = vmatpush1.msra.mxu0 %v67
  %1359 = vmatprep.subr.mxu0 %v72
  %1360 = vmatpush1.msra.mxu0 %v71
  %1361 = vmatprep.subr.mxu0 %v76
  %1362 = vmatpush1.msra.mxu0 %v75
  %1363 = vmatprep.subr.mxu0 %v80
  %1364 = vmatpush1.msra.mxu0 %v79
  %1365 = vmatprep.subr.mxu0 0.0
  %1366 = vmatpush1.msra.mxu0 0.0
  %1367 = vmatprep.subr.mxu0 0.0
  %1368 = vmatpush1.msra.mxu0 0.0
  %1369 = vmatprep.subr.mxu0 0.0
  %1370 = vmatpush1.msra.mxu0 0.0
  %1371 = vmatprep.subr.mxu0 0.0
  %1372 = vmatpush1.msra.mxu0 0.0
  %1373 = vmatprep.subr.mxu0 0.0
  %1374 = vmatpush1.msra.mxu0 0.0
  %1375 = vmatprep.subr.mxu0 0.0
  %1376 = vmatpush1.msra.mxu0 0.0
  %1377 = vmatprep.subr.mxu0 0.0
  %1378 = vmatpush1.msra.mxu0 0.0
  %1379 = vmatprep.subr.mxu0 0.0
  %1380 = vmatpush1.msra.mxu0 0.0
  %1381 = vmatprep.subr.mxu0 0.0
  %1382 = vmatpush1.msra.mxu0 0.0
  %1383 = vmatprep.subr.mxu0 0.0
  %1384 = vmatpush1.msra.mxu0 0.0
  %1385 = vmatprep.subr.mxu0 0.0
  %1386 = vmatpush1.msra.mxu0 0.0
  %1387 = vmatprep.subr.mxu0 0.0
  %1388 = vmatpush1.msra.mxu0 0.0
  %1389 = vmatprep.subr.mxu0 0.0
  %1390 = vmatpush1.msra.mxu0 0.0
  %1391 = vmatprep.subr.mxu0 0.0
  %1392 = vmatpush1.msra.mxu0 0.0
  %1393 = vmatprep.subr.mxu0 0.0
  %1394 = vmatpush1.msra.mxu0 0.0
  %1395 = vmatprep.subr.mxu0 0.0
  %1396 = vmatpush1.msra.mxu0 0.0
  %1397 = vmatprep.mubr.f32.mxu0 0.0
  %1398 = vmatmul.mubr.f32.gmra.mrb[0].mxu0 %v1254
  %v1399 = vpop.f32.mrb[0].mxu0
  %v1400 = vadd.f32 0.0, %v1399
  %v1401 = vpop.f32.mrb[0].mxu0
  %v1402 = vadd.f32 0.0, %v1401
  %1403 = vdwg.mxu0
  %v1404 = vadd.f32 %v1258, %v1329
  %v1405 = vadd.f32 %v1259, %v1331
  %v1406 = vadd.f32 %v1260, %v1400
  %v1407 = vadd.f32 %v1261, %v1402
  %v1408 = vtanh.pop %v1404
  %v1409 = vtanh.pop %v1405
  %v1410 = vtanh.pop %v1406
  %v1411 = vtanh.pop %v1407
  %v1412 = vmul.f32 %v1408, 0.5
  %v1413 = vmul.f32 %v1409, 0.5
  %v1414 = vmul.f32 %v1410, 0.5
  %v1415 = vadd.f32 %v1412, 0.5
  %v1416 = vadd.f32 %v1413, 0.5
  %v1417 = vadd.f32 %v1414, 0.5
  %v1418 = vmul.f32 %v1416, %v1252
  %v1419 = vmul.f32 %v1415, %v1411
  %v1420 = vadd.f32 %v1418, %v1419
  %v1421 = vtanh.pop %v1420
  %v1422 = vmul.f32 %v1417, %v1421
  %s1423 = scalar_lea.vmem %s2, 56
  %1424 = vst [vmem:[%s1423] sm:$0xff] %v1422
  %1425 = vst [vmem:[#allocation2] sm:$0xff] %v1422
  %1426 = vst [vmem:[#allocation3] sm:$0xff] %v1420
  // Predicated region
  $region14: #{lstm_conv_forward.1} parent=0 // pred_check
    _
  $region15: #{lstm_conv_forward.1} parent=0 // pred_check_branch
    %1428 = sbr.rel (0) target = $region17
  $region16: #{lstm_conv_forward.1} parent=0 // pred_region
    _
  $region17: #{lstm_conv_forward.1} parent=0 // pred_fallthru
    _
  // Predicated region
  $region18: #{lstm_conv_forward.1} parent=0 // pred_check
    _
  $region19: #{lstm_conv_forward.1} parent=0 // pred_check_branch
    %1430 = sbr.rel (0) target = $region21
  $region20: #{lstm_conv_forward.1} parent=0 // pred_region
    _
  $region21: #{lstm_conv_forward.1} parent=0 // pred_fallthru
    _

</llo_original>
